<compile_context>
chip_gen: v6e
topology: v6e:2x2x1
jax: 0.10.0
libtpu: 0.0.40
codegen_flags: <defaults>
</compile_context>

<pallas_src>
import functools

import jax
import jax.numpy as jnp
import numpy as np
from jax.experimental import pallas as pl
from jax.experimental.pallas import tpu as pltpu


def _conv_bn_silu_kernel(x_ref, w_ref, scale_ref, bias_ref, o_ref, *,
                         KH, KW, TH, Wo, Cin_g, Cout, groups, stride):
    """One grid step = one (batch, output-row-tile) block.

    x_ref:     (1, Hp, Wp, Cin)      padded input, resident across the row-tile axis
    w_ref:     (KH, KW, Cin_g, Cout) conv weights (bf16)
    scale_ref: (1, Cout)             folded BN scale (f32)
    bias_ref:  (1, Cout)             folded BN bias  (f32)
    o_ref:     (1, TH, Wo, Cout)     output block (f32)
    """
    th = pl.program_id(1)
    # First input row used by this output-row tile (aligned to TH*stride).
    row0 = pl.multiple_of(th * (TH * stride), TH * stride)
    M = TH * Wo
    Cout_g = Cout // groups

    def tap(kh, kw, ci0, cw):
        # (TH, Wo, cw) input window for conv tap (kh, kw), flattened to (TH*Wo, cw).
        if stride == 1:
            p = x_ref[0, pl.ds(row0 + kh, TH), kw:kw + Wo, ci0:ci0 + cw]
        else:
            p = x_ref[0, pl.ds(row0 + kh, TH, stride),
                      pl.ds(kw, Wo, stride), pl.ds(ci0, cw)]
        return p.reshape(M, cw)

    if Cin_g == 1 and Cout_g == 1:
        # Depthwise (groups == Cin == Cout): K=1 matmuls would waste the MXU; use a
        # per-channel multiply-accumulate on the VPU with an f32 vreg accumulator.
        acc = jnp.zeros((M, Cout), jnp.float32)
        for kh in range(KH):
            for kw in range(KW):
                patch = tap(kh, kw, 0, Cout).astype(jnp.float32)
                wrow = w_ref[kh, kw].astype(jnp.float32)            # (1, Cout)
                acc = acc + patch * wrow
    else:
        # Dense / grouped conv on the MXU (bf16 in, f32 accumulation). Each group's
        # partials accumulate in a local vreg value; the full-channel result is
        # assembled once at the end (no per-tap VMEM read-modify-write).
        group_accs = []
        for g in range(groups):
            ci0, co0 = g * Cin_g, g * Cout_g
            acc_g = jnp.zeros((M, Cout_g), jnp.float32)
            for kh in range(KH):
                for kw in range(KW):
                    acc_g = acc_g + jnp.dot(
                        tap(kh, kw, ci0, Cin_g),
                        w_ref[kh, kw, :, co0:co0 + Cout_g],
                        preferred_element_type=jnp.float32)
            group_accs.append(acc_g)
        acc = group_accs[0] if groups == 1 else jnp.concatenate(group_accs, axis=-1)

    # Folded BatchNorm (eval mode) + SiLU, fused on the f32 accumulator; single store.
    y = acc * scale_ref[...] + bias_ref[...]
    y = y * jax.nn.sigmoid(y)
    o_ref[...] = y.reshape(1, TH, Wo, Cout).astype(o_ref.dtype)


def _pick_row_tile(Ho, Wo, Cout):
    """Largest divisor of Ho keeping the f32 accumulator block <= ~2 MiB and giving at
    least 2 row tiles when Ho is big enough (pipelining + megacore at small batch)."""
    budget_rows = max(1, (2 * 1024 * 1024) // max(1, Wo * Cout * 4))
    cap = max(1, min(budget_rows, Ho // 2 if Ho >= 16 else Ho))
    best = 1
    for th in range(1, Ho + 1):
        if Ho % th == 0 and th <= cap:
            best = th
    return best


def conv_bn_silu(x_nchw, weight, gamma, beta, running_mean, running_var, *,
                 stride=1, padding=0, groups=1, eps=1e-5,
                 compute_dtype=jnp.bfloat16, row_tile=None):
    """PyTorch-equivalent forward of Conv(in,out,k,stride,padding,groups):
       SiLU(BN(Conv2d(x))) with bias=False and BN in inference mode."""
    N, Cin, H, W = x_nchw.shape
    Cout, Cin_g, KH, KW = weight.shape
    assert Cin_g * groups == Cin and Cout % groups == 0
    Ho = (H + 2 * padding - KH) // stride + 1
    Wo = (W + 2 * padding - KW) // stride + 1
    Hp, Wp = H + 2 * padding, W + 2 * padding

    # Glue: NCHW -> NHWC (+ zero pad), weight OIHW -> (KH, KW, Cin_g, Cout); bf16 MXU feeds.
    x = jnp.transpose(x_nchw, (0, 2, 3, 1)).astype(compute_dtype)
    x = jnp.pad(x, ((0, 0), (padding, padding), (padding, padding), (0, 0)))
    w = jnp.transpose(weight, (2, 3, 1, 0)).astype(compute_dtype)

    # Folded inference-mode BatchNorm (kept in f32).
    scale = (gamma / jnp.sqrt(running_var + eps)).astype(jnp.float32)
    bias = (beta - running_mean * scale).astype(jnp.float32)
    scale2 = scale.reshape(1, Cout)
    bias2 = bias.reshape(1, Cout)

    TH = row_tile if row_tile is not None else _pick_row_tile(Ho, Wo, Cout)
    assert Ho % TH == 0, "row_tile must divide the output height"
    n_th = Ho // TH

    kernel = functools.partial(
        _conv_bn_silu_kernel, KH=KH, KW=KW, TH=TH, Wo=Wo,
        Cin_g=Cin_g, Cout=Cout, groups=groups, stride=stride)

    # VMEM budget: double-buffered input image + weights + double-buffered output block
    # + slack, capped so we never ask for more than v7x's 64 MiB physical VMEM.
    bpe = jnp.dtype(compute_dtype).itemsize
    vmem_need = (2 * (Hp * Wp * Cin * bpe + TH * Wo * Cout * 4)
                 + KH * KW * Cin_g * Cout * bpe + (4 << 20))
    vmem_limit = int(min(max(vmem_need, 32 << 20), 64 << 20))

    cost = pl.CostEstimate(
        flops=2 * N * Ho * Wo * Cout * Cin_g * KH * KW,
        transcendentals=N * Ho * Wo * Cout,                 # sigmoid inside SiLU
        bytes_accessed=(x.size * bpe + w.size * bpe
                        + N * Ho * Wo * Cout * 4 + 2 * Cout * 4))

    out_nhwc = pl.pallas_call(
        kernel,
        out_shape=jax.ShapeDtypeStruct((N, Ho, Wo, Cout), jnp.float32),
        grid_spec=pltpu.PrefetchScalarGridSpec(
            num_scalar_prefetch=0,
            grid=(N, n_th),
            in_specs=[
                # Full padded image per batch; resident across the row-tile axis.
                pl.BlockSpec((1, Hp, Wp, Cin), lambda n, t: (n, 0, 0, 0)),
                pl.BlockSpec((KH, KW, Cin_g, Cout), lambda n, t: (0, 0, 0, 0)),
                pl.BlockSpec((1, Cout), lambda n, t: (0, 0)),
                pl.BlockSpec((1, Cout), lambda n, t: (0, 0)),
            ],
            out_specs=pl.BlockSpec((1, TH, Wo, Cout), lambda n, t: (n, t, 0, 0)),
        ),
        compiler_params=pltpu.CompilerParams(
            dimension_semantics=("parallel", "parallel"),
            vmem_limit_bytes=vmem_limit),
        cost_estimate=cost,
    )(x, w, scale2, bias2)

    return jnp.transpose(out_nhwc, (0, 3, 1, 2))  # back to NCHW


def _reference(x, weight, gamma, beta, mean, var, *, stride, padding, groups, eps=1e-5):
    y = jax.lax.conv_general_dilated(
        x, weight, window_strides=(stride, stride),
        padding=((padding, padding), (padding, padding)),
        dimension_numbers=("NCHW", "OIHW", "NCHW"),
        feature_group_count=groups)
    scale = gamma / jnp.sqrt(var + eps)
    bias = beta - mean * scale
    y = y * scale[None, :, None, None] + bias[None, :, None, None]
    return y * jax.nn.sigmoid(y)


if __name__ == "__main__":
    def run_case(key, N, Cin, Cout, H, W, K, stride, padding, groups):
        kx, kw, kg, kb, km, kv = jax.random.split(key, 6)
        x = jax.random.normal(kx, (N, Cin, H, W), dtype=jnp.float32)
        weight = 0.1 * jax.random.normal(kw, (Cout, Cin // groups, K, K), dtype=jnp.float32)
        gamma = jax.random.uniform(kg, (Cout,), minval=0.5, maxval=1.5, dtype=jnp.float32)
        beta = 0.1 * jax.random.normal(kb, (Cout,), dtype=jnp.float32)
        mean = 0.05 * jax.random.normal(km, (Cout,), dtype=jnp.float32)
        var = jax.random.uniform(kv, (Cout,), minval=0.5, maxval=1.5, dtype=jnp.float32)

        out = conv_bn_silu(x, weight, gamma, beta, mean, var,
                           stride=stride, padding=padding, groups=groups)
        out = jax.block_until_ready(out)
        ref = _reference(x, weight, gamma, beta, mean, var,
                         stride=stride, padding=padding, groups=groups)
        # Tolerance loosened vs. the pure-f32 reference because x/w are fed bf16
        # (accumulation stays f32).
        np.testing.assert_allclose(np.asarray(out), np.asarray(ref), rtol=3e-2, atol=3e-2)

    key = jax.random.PRNGKey(0)
    k1, k2 = jax.random.split(key)
    # Conv(in=4, out=8, k=3, stride=1, padding=1, groups=1), batch 2, 16x16 (MXU path,
    # row-tiled grid (2, 2)).
    run_case(k1, N=2, Cin=4, Cout=8, H=16, W=16, K=3, stride=1, padding=1, groups=1)
    # Depthwise Conv(in=8, out=8, k=3, stride=1, padding=1, groups=8) exercises the VPU path.
    run_case(k2, N=1, Cin=8, Cout=8, H=16, W=16, K=3, stride=1, padding=1, groups=8)

    print("KERNEL_OK")
</pallas_src>

<mosaic_0001>
module attributes {stable_mosaic.version = 11 : i64} {
  func.func @_conv_bn_silu_kernel(%arg0: i32, %arg1: i32, %arg2: memref<1x18x18x4xbf16, #tpu.memory_space<vmem>>, %arg3: memref<3x3x4x8xbf16, #tpu.memory_space<vmem>>, %arg4: memref<1x8xf32, #tpu.memory_space<vmem>>, %arg5: memref<1x8xf32, #tpu.memory_space<vmem>>, %arg6: memref<1x8x16x8xf32, #tpu.memory_space<vmem>>) attributes {dimension_semantics = [#tpu.dimension_semantics<parallel>, #tpu.dimension_semantics<parallel>], iteration_bounds = array<i64: 2, 2>, scalar_prefetch = 0 : i64, scratch_operands = 0 : i64, tpu.core_type = #tpu.core_type<tc>, window_params = [{transform_indices = @transform_0, window_bounds = array<i64: 1, 18, 18, 4>}, {pipeline_mode = #tpu.pipeline_mode<synchronous>, transform_indices = @transform_1, window_bounds = array<i64: 3, 3, 4, 8>}, {pipeline_mode = #tpu.pipeline_mode<synchronous>, transform_indices = @transform_2, window_bounds = array<i64: 1, 8>}, {pipeline_mode = #tpu.pipeline_mode<synchronous>, transform_indices = @transform_3, window_bounds = array<i64: 1, 8>}, {transform_indices = @transform_4, window_bounds = array<i64: 1, 8, 16, 8>}]} {
    %c8_i32 = arith.constant 8 : i32
    %0 = arith.muli %arg1, %c8_i32 : i32
    %1 = tpu.assume_multiple %0, 8 : i32
    %cst = arith.constant 0.000000e+00 : f32
    %2 = vector.broadcast %cst : f32 to vector<128x8xf32>
    %c0_i32 = arith.constant 0 : i32
    %3 = arith.addi %1, %c0_i32 : i32
    %c0 = arith.constant 0 : index
    %4 = arith.index_cast %3 : i32 to index
    %c0_0 = arith.constant 0 : index
    %c0_1 = arith.constant 0 : index
    %5 = vector.load %arg2[%c0, %4, %c0_0, %c0_1] : memref<1x18x18x4xbf16, #tpu.memory_space<vmem>>, vector<1x8x16x4xbf16>
    %6 = vector.shape_cast %5 : vector<1x8x16x4xbf16> to vector<8x16x4xbf16>
    %7 = vector.shape_cast %6 : vector<8x16x4xbf16> to vector<128x4xbf16>
    %c0_2 = arith.constant 0 : index
    %c0_3 = arith.constant 0 : index
    %c0_4 = arith.constant 0 : index
    %c0_5 = arith.constant 0 : index
    %8 = vector.load %arg3[%c0_2, %c0_3, %c0_4, %c0_5] : memref<3x3x4x8xbf16, #tpu.memory_space<vmem>>, vector<1x1x4x8xbf16>
    %9 = vector.shape_cast %8 : vector<1x1x4x8xbf16> to vector<4x8xbf16>
    %cst_6 = arith.constant dense<0.000000e+00> : vector<128x8xf32>
    %10 = tpu.matmul %7, %9, %cst_6 {dimension_numbers = #tpu.dot_dimension_numbers<[1], [0], [0], [1], [0, 0, 1, 1], [], []>} : vector<128x4xbf16>, vector<4x8xbf16>, vector<128x8xf32> -> vector<128x8xf32>
    %11 = arith.addf %2, %10 : vector<128x8xf32>
    %c0_i32_7 = arith.constant 0 : i32
    %12 = arith.addi %1, %c0_i32_7 : i32
    %c0_8 = arith.constant 0 : index
    %13 = arith.index_cast %12 : i32 to index
    %c1 = arith.constant 1 : index
    %c0_9 = arith.constant 0 : index
    %14 = vector.load %arg2[%c0_8, %13, %c1, %c0_9] : memref<1x18x18x4xbf16, #tpu.memory_space<vmem>>, vector<1x8x16x4xbf16>
    %15 = vector.shape_cast %14 : vector<1x8x16x4xbf16> to vector<8x16x4xbf16>
    %16 = vector.shape_cast %15 : vector<8x16x4xbf16> to vector<128x4xbf16>
    %c0_10 = arith.constant 0 : index
    %c1_11 = arith.constant 1 : index
    %c0_12 = arith.constant 0 : index
    %c0_13 = arith.constant 0 : index
    %17 = vector.load %arg3[%c0_10, %c1_11, %c0_12, %c0_13] : memref<3x3x4x8xbf16, #tpu.memory_space<vmem>>, vector<1x1x4x8xbf16>
    %18 = vector.shape_cast %17 : vector<1x1x4x8xbf16> to vector<4x8xbf16>
    %cst_14 = arith.constant dense<0.000000e+00> : vector<128x8xf32>
    %19 = tpu.matmul %16, %18, %cst_14 {dimension_numbers = #tpu.dot_dimension_numbers<[1], [0], [0], [1], [0, 0, 1, 1], [], []>} : vector<128x4xbf16>, vector<4x8xbf16>, vector<128x8xf32> -> vector<128x8xf32>
    %20 = arith.addf %11, %19 : vector<128x8xf32>
    %c0_i32_15 = arith.constant 0 : i32
    %21 = arith.addi %1, %c0_i32_15 : i32
    %c0_16 = arith.constant 0 : index
    %22 = arith.index_cast %21 : i32 to index
    %c2 = arith.constant 2 : index
    %c0_17 = arith.constant 0 : index
    %23 = vector.load %arg2[%c0_16, %22, %c2, %c0_17] : memref<1x18x18x4xbf16, #tpu.memory_space<vmem>>, vector<1x8x16x4xbf16>
    %24 = vector.shape_cast %23 : vector<1x8x16x4xbf16> to vector<8x16x4xbf16>
    %25 = vector.shape_cast %24 : vector<8x16x4xbf16> to vector<128x4xbf16>
    %c0_18 = arith.constant 0 : index
    %c2_19 = arith.constant 2 : index
    %c0_20 = arith.constant 0 : index
    %c0_21 = arith.constant 0 : index
    %26 = vector.load %arg3[%c0_18, %c2_19, %c0_20, %c0_21] : memref<3x3x4x8xbf16, #tpu.memory_space<vmem>>, vector<1x1x4x8xbf16>
    %27 = vector.shape_cast %26 : vector<1x1x4x8xbf16> to vector<4x8xbf16>
    %cst_22 = arith.constant dense<0.000000e+00> : vector<128x8xf32>
    %28 = tpu.matmul %25, %27, %cst_22 {dimension_numbers = #tpu.dot_dimension_numbers<[1], [0], [0], [1], [0, 0, 1, 1], [], []>} : vector<128x4xbf16>, vector<4x8xbf16>, vector<128x8xf32> -> vector<128x8xf32>
    %29 = arith.addf %20, %28 : vector<128x8xf32>
    %c1_i32 = arith.constant 1 : i32
    %30 = arith.addi %1, %c1_i32 : i32
    %c0_23 = arith.constant 0 : index
    %31 = arith.index_cast %30 : i32 to index
    %c0_24 = arith.constant 0 : index
    %c0_25 = arith.constant 0 : index
    %32 = vector.load %arg2[%c0_23, %31, %c0_24, %c0_25] : memref<1x18x18x4xbf16, #tpu.memory_space<vmem>>, vector<1x8x16x4xbf16>
    %33 = vector.shape_cast %32 : vector<1x8x16x4xbf16> to vector<8x16x4xbf16>
    %34 = vector.shape_cast %33 : vector<8x16x4xbf16> to vector<128x4xbf16>
    %c1_26 = arith.constant 1 : index
    %c0_27 = arith.constant 0 : index
    %c0_28 = arith.constant 0 : index
    %c0_29 = arith.constant 0 : index
    %35 = vector.load %arg3[%c1_26, %c0_27, %c0_28, %c0_29] : memref<3x3x4x8xbf16, #tpu.memory_space<vmem>>, vector<1x1x4x8xbf16>
    %36 = vector.shape_cast %35 : vector<1x1x4x8xbf16> to vector<4x8xbf16>
    %cst_30 = arith.constant dense<0.000000e+00> : vector<128x8xf32>
    %37 = tpu.matmul %34, %36, %cst_30 {dimension_numbers = #tpu.dot_dimension_numbers<[1], [0], [0], [1], [0, 0, 1, 1], [], []>} : vector<128x4xbf16>, vector<4x8xbf16>, vector<128x8xf32> -> vector<128x8xf32>
    %38 = arith.addf %29, %37 : vector<128x8xf32>
    %c1_i32_31 = arith.constant 1 : i32
    %39 = arith.addi %1, %c1_i32_31 : i32
    %c0_32 = arith.constant 0 : index
    %40 = arith.index_cast %39 : i32 to index
    %c1_33 = arith.constant 1 : index
    %c0_34 = arith.constant 0 : index
    %41 = vector.load %arg2[%c0_32, %40, %c1_33, %c0_34] : memref<1x18x18x4xbf16, #tpu.memory_space<vmem>>, vector<1x8x16x4xbf16>
    %42 = vector.shape_cast %41 : vector<1x8x16x4xbf16> to vector<8x16x4xbf16>
    %43 = vector.shape_cast %42 : vector<8x16x4xbf16> to vector<128x4xbf16>
    %c1_35 = arith.constant 1 : index
    %c1_36 = arith.constant 1 : index
    %c0_37 = arith.constant 0 : index
    %c0_38 = arith.constant 0 : index
    %44 = vector.load %arg3[%c1_35, %c1_36, %c0_37, %c0_38] : memref<3x3x4x8xbf16, #tpu.memory_space<vmem>>, vector<1x1x4x8xbf16>
    %45 = vector.shape_cast %44 : vector<1x1x4x8xbf16> to vector<4x8xbf16>
    %cst_39 = arith.constant dense<0.000000e+00> : vector<128x8xf32>
    %46 = tpu.matmul %43, %45, %cst_39 {dimension_numbers = #tpu.dot_dimension_numbers<[1], [0], [0], [1], [0, 0, 1, 1], [], []>} : vector<128x4xbf16>, vector<4x8xbf16>, vector<128x8xf32> -> vector<128x8xf32>
    %47 = arith.addf %38, %46 : vector<128x8xf32>
    %c1_i32_40 = arith.constant 1 : i32
    %48 = arith.addi %1, %c1_i32_40 : i32
    %c0_41 = arith.constant 0 : index
    %49 = arith.index_cast %48 : i32 to index
    %c2_42 = arith.constant 2 : index
    %c0_43 = arith.constant 0 : index
    %50 = vector.load %arg2[%c0_41, %49, %c2_42, %c0_43] : memref<1x18x18x4xbf16, #tpu.memory_space<vmem>>, vector<1x8x16x4xbf16>
    %51 = vector.shape_cast %50 : vector<1x8x16x4xbf16> to vector<8x16x4xbf16>
    %52 = vector.shape_cast %51 : vector<8x16x4xbf16> to vector<128x4xbf16>
    %c1_44 = arith.constant 1 : index
    %c2_45 = arith.constant 2 : index
    %c0_46 = arith.constant 0 : index
    %c0_47 = arith.constant 0 : index
    %53 = vector.load %arg3[%c1_44, %c2_45, %c0_46, %c0_47] : memref<3x3x4x8xbf16, #tpu.memory_space<vmem>>, vector<1x1x4x8xbf16>
    %54 = vector.shape_cast %53 : vector<1x1x4x8xbf16> to vector<4x8xbf16>
    %cst_48 = arith.constant dense<0.000000e+00> : vector<128x8xf32>
    %55 = tpu.matmul %52, %54, %cst_48 {dimension_numbers = #tpu.dot_dimension_numbers<[1], [0], [0], [1], [0, 0, 1, 1], [], []>} : vector<128x4xbf16>, vector<4x8xbf16>, vector<128x8xf32> -> vector<128x8xf32>
    %56 = arith.addf %47, %55 : vector<128x8xf32>
    %c2_i32 = arith.constant 2 : i32
    %57 = arith.addi %1, %c2_i32 : i32
    %c0_49 = arith.constant 0 : index
    %58 = arith.index_cast %57 : i32 to index
    %c0_50 = arith.constant 0 : index
    %c0_51 = arith.constant 0 : index
    %59 = vector.load %arg2[%c0_49, %58, %c0_50, %c0_51] : memref<1x18x18x4xbf16, #tpu.memory_space<vmem>>, vector<1x8x16x4xbf16>
    %60 = vector.shape_cast %59 : vector<1x8x16x4xbf16> to vector<8x16x4xbf16>
    %61 = vector.shape_cast %60 : vector<8x16x4xbf16> to vector<128x4xbf16>
    %c2_52 = arith.constant 2 : index
    %c0_53 = arith.constant 0 : index
    %c0_54 = arith.constant 0 : index
    %c0_55 = arith.constant 0 : index
    %62 = vector.load %arg3[%c2_52, %c0_53, %c0_54, %c0_55] : memref<3x3x4x8xbf16, #tpu.memory_space<vmem>>, vector<1x1x4x8xbf16>
    %63 = vector.shape_cast %62 : vector<1x1x4x8xbf16> to vector<4x8xbf16>
    %cst_56 = arith.constant dense<0.000000e+00> : vector<128x8xf32>
    %64 = tpu.matmul %61, %63, %cst_56 {dimension_numbers = #tpu.dot_dimension_numbers<[1], [0], [0], [1], [0, 0, 1, 1], [], []>} : vector<128x4xbf16>, vector<4x8xbf16>, vector<128x8xf32> -> vector<128x8xf32>
    %65 = arith.addf %56, %64 : vector<128x8xf32>
    %c2_i32_57 = arith.constant 2 : i32
    %66 = arith.addi %1, %c2_i32_57 : i32
    %c0_58 = arith.constant 0 : index
    %67 = arith.index_cast %66 : i32 to index
    %c1_59 = arith.constant 1 : index
    %c0_60 = arith.constant 0 : index
    %68 = vector.load %arg2[%c0_58, %67, %c1_59, %c0_60] : memref<1x18x18x4xbf16, #tpu.memory_space<vmem>>, vector<1x8x16x4xbf16>
    %69 = vector.shape_cast %68 : vector<1x8x16x4xbf16> to vector<8x16x4xbf16>
    %70 = vector.shape_cast %69 : vector<8x16x4xbf16> to vector<128x4xbf16>
    %c2_61 = arith.constant 2 : index
    %c1_62 = arith.constant 1 : index
    %c0_63 = arith.constant 0 : index
    %c0_64 = arith.constant 0 : index
    %71 = vector.load %arg3[%c2_61, %c1_62, %c0_63, %c0_64] : memref<3x3x4x8xbf16, #tpu.memory_space<vmem>>, vector<1x1x4x8xbf16>
    %72 = vector.shape_cast %71 : vector<1x1x4x8xbf16> to vector<4x8xbf16>
    %cst_65 = arith.constant dense<0.000000e+00> : vector<128x8xf32>
    %73 = tpu.matmul %70, %72, %cst_65 {dimension_numbers = #tpu.dot_dimension_numbers<[1], [0], [0], [1], [0, 0, 1, 1], [], []>} : vector<128x4xbf16>, vector<4x8xbf16>, vector<128x8xf32> -> vector<128x8xf32>
    %74 = arith.addf %65, %73 : vector<128x8xf32>
    %c2_i32_66 = arith.constant 2 : i32
    %75 = arith.addi %1, %c2_i32_66 : i32
    %c0_67 = arith.constant 0 : index
    %76 = arith.index_cast %75 : i32 to index
    %c2_68 = arith.constant 2 : index
    %c0_69 = arith.constant 0 : index
    %77 = vector.load %arg2[%c0_67, %76, %c2_68, %c0_69] : memref<1x18x18x4xbf16, #tpu.memory_space<vmem>>, vector<1x8x16x4xbf16>
    %78 = vector.shape_cast %77 : vector<1x8x16x4xbf16> to vector<8x16x4xbf16>
    %79 = vector.shape_cast %78 : vector<8x16x4xbf16> to vector<128x4xbf16>
    %c2_70 = arith.constant 2 : index
    %c2_71 = arith.constant 2 : index
    %c0_72 = arith.constant 0 : index
    %c0_73 = arith.constant 0 : index
    %80 = vector.load %arg3[%c2_70, %c2_71, %c0_72, %c0_73] : memref<3x3x4x8xbf16, #tpu.memory_space<vmem>>, vector<1x1x4x8xbf16>
    %81 = vector.shape_cast %80 : vector<1x1x4x8xbf16> to vector<4x8xbf16>
    %cst_74 = arith.constant dense<0.000000e+00> : vector<128x8xf32>
    %82 = tpu.matmul %79, %81, %cst_74 {dimension_numbers = #tpu.dot_dimension_numbers<[1], [0], [0], [1], [0, 0, 1, 1], [], []>} : vector<128x4xbf16>, vector<4x8xbf16>, vector<128x8xf32> -> vector<128x8xf32>
    %83 = arith.addf %74, %82 : vector<128x8xf32>
    %c0_75 = arith.constant 0 : index
    %c0_76 = arith.constant 0 : index
    %84 = vector.load %arg4[%c0_75, %c0_76] : memref<1x8xf32, #tpu.memory_space<vmem>>, vector<1x8xf32>
    %85 = vector.broadcast %84 : vector<1x8xf32> to vector<128x8xf32>
    %86 = arith.mulf %83, %85 : vector<128x8xf32>
    %c0_77 = arith.constant 0 : index
    %c0_78 = arith.constant 0 : index
    %87 = vector.load %arg5[%c0_77, %c0_78] : memref<1x8xf32, #tpu.memory_space<vmem>>, vector<1x8xf32>
    %88 = vector.broadcast %87 : vector<1x8xf32> to vector<128x8xf32>
    %89 = arith.addf %86, %88 : vector<128x8xf32>
    %90 = arith.negf %89 : vector<128x8xf32>
    %91 = math.exp %90 : vector<128x8xf32>
    %cst_79 = arith.constant 1.000000e+00 : f32
    %92 = vector.broadcast %cst_79 : f32 to vector<128x8xf32>
    %93 = arith.addf %92, %91 : vector<128x8xf32>
    %94 = arith.divf %92, %93 : vector<128x8xf32>
    %95 = arith.mulf %89, %94 : vector<128x8xf32>
    %96 = vector.shape_cast %95 : vector<128x8xf32> to vector<1x8x16x8xf32>
    %c0_80 = arith.constant 0 : index
    %c0_81 = arith.constant 0 : index
    %c0_82 = arith.constant 0 : index
    %c0_83 = arith.constant 0 : index
    %97 = vector.load %arg6[%c0_80, %c0_81, %c0_82, %c0_83] : memref<1x8x16x8xf32, #tpu.memory_space<vmem>>, vector<1x8x16x8xf32>
    tpu.vector_store %arg6[%c0_80, %c0_81, %c0_82, %c0_83], %96 {strides = array<i32>} : memref<1x8x16x8xf32, #tpu.memory_space<vmem>>, vector<1x8x16x8xf32>,
    return
  }
  func.func @transform_0(%arg0: i32, %arg1: i32) -> (i32, i32, i32, i32) {
    %c0_i32 = arith.constant 0 : i32
    %c0_i32_0 = arith.constant 0 : i32
    %c0_i32_1 = arith.constant 0 : i32
    %c0_i32_2 = arith.constant 0 : i32
    return %arg0, %c0_i32, %c0_i32_0, %c0_i32_1 : i32, i32, i32, i32
  }
  func.func @transform_1(%arg0: i32, %arg1: i32) -> (i32, i32, i32, i32) {
    %c0_i32 = arith.constant 0 : i32
    %c0_i32_0 = arith.constant 0 : i32
    %c0_i32_1 = arith.constant 0 : i32
    %c0_i32_2 = arith.constant 0 : i32
    %c0_i32_3 = arith.constant 0 : i32
    return %c0_i32, %c0_i32_0, %c0_i32_1, %c0_i32_2 : i32, i32, i32, i32
  }
  func.func @transform_2(%arg0: i32, %arg1: i32) -> (i32, i32) {
    %c0_i32 = arith.constant 0 : i32
    %c0_i32_0 = arith.constant 0 : i32
    %c0_i32_1 = arith.constant 0 : i32
    return %c0_i32, %c0_i32_0 : i32, i32
  }
  func.func @transform_3(%arg0: i32, %arg1: i32) -> (i32, i32) {
    %c0_i32 = arith.constant 0 : i32
    %c0_i32_0 = arith.constant 0 : i32
    %c0_i32_1 = arith.constant 0 : i32
    return %c0_i32, %c0_i32_0 : i32, i32
  }
  func.func @transform_4(%arg0: i32, %arg1: i32) -> (i32, i32, i32, i32) {
    %c0_i32 = arith.constant 0 : i32
    %c0_i32_0 = arith.constant 0 : i32
    %c0_i32_1 = arith.constant 0 : i32
    return %arg0, %arg1, %c0_i32, %c0_i32_0 : i32, i32, i32, i32
  }
}

</mosaic_0001>

<llo_original>
// kernel: tpu_custom_call.1
$region0: #{tpu_custom_call.1}
  #allocation0 [shape = 'u32[]', space=smem, size = 0x4, offset = 0x4, fixed_abs, tag = 'smem constant byte address 0x4 - core index']
  #allocation1 [shape = 'u32[144,128]{1,0:T(1,128)}', space=vmem, size = 0x12000, scoped, tag = 'internal scratch']
  %s0 = inlined_call_operand.vmem [shape: bf16[2,18,18,4], index: 0, kind: input, shape index: {}]
  %s1 = inlined_call_operand.vmem [shape: bf16[3,3,4,8], index: 1, kind: input, shape index: {}]
  %s2 = inlined_call_operand.vmem [shape: f32[1,8], index: 2, kind: input, shape index: {}]
  %s3 = inlined_call_operand.vmem [shape: f32[1,8], index: 3, kind: input, shape index: {}]
  %s4 = inlined_call_operand.vmem [shape: f32[2,16,16,8], index: 4, kind: output, shape index: {}]
  %s5 = sld [smem:[#allocation0]]
  $region49: #{tpu_custom_call.1} parent=0
    _
  %s7 = ssub.s32 1, %s5
  %s8 = scalar_select 0, %s7, %s5
  loop: start=0, step=1, limit=6
  $region2: #{tpu_custom_call.1} parent=0 // loop_pre_header
    _
  $region3: #{tpu_custom_call.1} parent=0 // loop_header
    %s10 = sphi 0, %s14
    %p11 = scmp.ge.s32.totalorder %s10, 6
    %s17 = sphi 0, %s29
    %s18 = sphi 0, %s25
    %s19 = sphi 0, %s17
    %s20 = sphi 0, %s18
    %s21 = sphi 0, %s19
    %s22 = sphi 0, %s20
    %s32 = sphi 0, %s34
    %s35 = sphi 0, %s32
    %s36 = sphi 0, %s35
    %s52 = sphi 0, %s36
    %s56 = sphi 0, %s56
    %s58 = sphi 0, %s56
    %s59 = sphi 0, %s58
    %s73 = sphi 0, %s59
    %s77 = sphi 0, %s77
    %s79 = sphi 0, %s77
    %s80 = sphi 0, %s79
    %s94 = sphi 0, %s80
    %s98 = sphi 0, %s98
    %s100 = sphi 0, %s98
    %s101 = sphi 0, %s100
    %s115 = sphi 0, %s101
    %s123 = sphi 0, %s125
    %s126 = sphi 0, %s123
    %s127 = sphi 0, %s126
    %s143 = sphi 0, %s127
  $region4: #{tpu_custom_call.1} parent=0 // loop_header_branch
    %13 = sbr.rel (%p11) target = $region8
  $region5: #{tpu_custom_call.1} parent=0 // loop_body
    %s15 = ssub.s32 %s10, 1
    %s16 = ssub.s32 %s10, 2
    %s23 = sadd.s32 1, %s18
    %p24 = scmp.ge.s32.totalorder %s23, 2
    %s25 = scalar_select %p24, 0, %s23
    %s26 = sadd.s32 1, %s17
    %s27 = scalar_select %p24, %s26, %s17
    %p28 = scmp.ge.s32.totalorder %s27, 2
    %s29 = scalar_select %p28, 0, %s27
    %s30 = ssub.s32 %s17, %s29
    %p31 = scmp.eq.s32.totalorder %s30, 0
    %s33 = sadd.s32 %s32, 1
    %s34 = scalar_select %p31, %s32, %s33
    %p37 = pneg %p31
    %p38 = scmp.eq.s32.totalorder %s10, 3
    %p39 = por %p37, %p38
    %p40 = scmp.ne.s32.totalorder %s32, %s35
    %p41 = scmp.eq.s32.totalorder %s10, 0
    %p42 = por %p40, %p41
    %p43 = scmp.ne.s32.totalorder %s32, %s35
    %p44 = scmp.eq.s32.totalorder %s15, 3
    %p45 = por %p43, %p44
    %p46 = scmp.ne.s32.totalorder %s35, %s36
    %p47 = scmp.eq.s32.totalorder %s15, 0
    %p48 = por %p46, %p47
    %p49 = scmp.ne.s32.totalorder %s35, %s36
    %p50 = scmp.eq.s32.totalorder %s16, 3
    %p51 = por %p49, %p50
    %p53 = scmp.ne.s32.totalorder %s36, %s52
    %p54 = scmp.eq.s32.totalorder %s16, 0
    %p55 = por %p53, %p54
    %s57 = sadd.s32 %s56, 1
    %p60 = scmp.eq.s32.totalorder %s10, 3
    %p61 = scmp.ne.s32.totalorder %s56, %s58
    %p62 = scmp.eq.s32.totalorder %s10, 0
    %p63 = por %p61, %p62
    %p64 = scmp.ne.s32.totalorder %s56, %s58
    %p65 = scmp.eq.s32.totalorder %s15, 3
    %p66 = por %p64, %p65
    %p67 = scmp.ne.s32.totalorder %s58, %s59
    %p68 = scmp.eq.s32.totalorder %s15, 0
    %p69 = por %p67, %p68
    %p70 = scmp.ne.s32.totalorder %s58, %s59
    %p71 = scmp.eq.s32.totalorder %s16, 3
    %p72 = por %p70, %p71
    %p74 = scmp.ne.s32.totalorder %s59, %s73
    %p75 = scmp.eq.s32.totalorder %s16, 0
    %p76 = por %p74, %p75
    %s78 = sadd.s32 %s77, 1
    %p81 = scmp.eq.s32.totalorder %s10, 3
    %p82 = scmp.ne.s32.totalorder %s77, %s79
    %p83 = scmp.eq.s32.totalorder %s10, 0
    %p84 = por %p82, %p83
    %p85 = scmp.ne.s32.totalorder %s77, %s79
    %p86 = scmp.eq.s32.totalorder %s15, 3
    %p87 = por %p85, %p86
    %p88 = scmp.ne.s32.totalorder %s79, %s80
    %p89 = scmp.eq.s32.totalorder %s15, 0
    %p90 = por %p88, %p89
    %p91 = scmp.ne.s32.totalorder %s79, %s80
    %p92 = scmp.eq.s32.totalorder %s16, 3
    %p93 = por %p91, %p92
    %p95 = scmp.ne.s32.totalorder %s80, %s94
    %p96 = scmp.eq.s32.totalorder %s16, 0
    %p97 = por %p95, %p96
    %s99 = sadd.s32 %s98, 1
    %p102 = scmp.eq.s32.totalorder %s10, 3
    %p103 = scmp.ne.s32.totalorder %s98, %s100
    %p104 = scmp.eq.s32.totalorder %s10, 0
    %p105 = por %p103, %p104
    %p106 = scmp.ne.s32.totalorder %s98, %s100
    %p107 = scmp.eq.s32.totalorder %s15, 3
    %p108 = por %p106, %p107
    %p109 = scmp.ne.s32.totalorder %s100, %s101
    %p110 = scmp.eq.s32.totalorder %s15, 0
    %p111 = por %p109, %p110
    %p112 = scmp.ne.s32.totalorder %s100, %s101
    %p113 = scmp.eq.s32.totalorder %s16, 3
    %p114 = por %p112, %p113
    %p116 = scmp.ne.s32.totalorder %s101, %s115
    %p117 = scmp.eq.s32.totalorder %s16, 0
    %p118 = por %p116, %p117
    %s119 = ssub.s32 %s17, %s29
    %s120 = ssub.s32 %s18, %s25
    %s121 = sor.u32 %s119, %s120
    %p122 = scmp.eq.s32.totalorder %s121, 0
    %s124 = sadd.s32 %s123, 1
    %s125 = scalar_select %p122, %s123, %s124
    %p128 = pneg %p122
    %p129 = scmp.eq.s32.totalorder %s10, 3
    %p130 = por %p128, %p129
    %p131 = scmp.ne.s32.totalorder %s123, %s126
    %p132 = scmp.eq.s32.totalorder %s10, 0
    %p133 = por %p131, %p132
    %p134 = scmp.ne.s32.totalorder %s123, %s126
    %p135 = scmp.eq.s32.totalorder %s15, 3
    %p136 = por %p134, %p135
    %p137 = scmp.ne.s32.totalorder %s126, %s127
    %p138 = scmp.eq.s32.totalorder %s15, 0
    %p139 = por %p137, %p138
    %p140 = scmp.ne.s32.totalorder %s126, %s127
    %p141 = scmp.eq.s32.totalorder %s16, 3
    %p142 = por %p140, %p141
    %p144 = scmp.ne.s32.totalorder %s127, %s143
    %p145 = scmp.eq.s32.totalorder %s16, 0
    %p146 = por %p144, %p145
    %p147 = scmp.le.s32.totalorder 1, %s10
    %p148 = scmp.lt.s32.totalorder %s10, 5
    %p149 = pnand %p147, %p148
    %p150 = pneg %p149
    // Predicated region
    $region9: #{tpu_custom_call.1} parent=5 // pred_check
      _
    $region10: #{tpu_custom_call.1} parent=5 // pred_check_branch
      %152 = sbr.rel (%p149) target = $region12
    $region11: #{tpu_custom_call.1} parent=5 // pred_region
      %s153 = ssub.s32 %s10, 1
      // Predicated region
      $region13: #{tpu_custom_call.1} parent=11 // pred_check
        %p154 = pneg %p69
      $region14: #{tpu_custom_call.1} parent=11 // pred_check_branch
        %156 = sbr.rel (%p154) target = $region16
      $region15: #{tpu_custom_call.1} parent=11 // pred_region
        _
      $region16: #{tpu_custom_call.1} parent=11 // pred_fallthru
        _
      // Predicated region
      $region17: #{tpu_custom_call.1} parent=11 // pred_check
        %p157 = pneg %p90
      $region18: #{tpu_custom_call.1} parent=11 // pred_check_branch
        %159 = sbr.rel (%p157) target = $region20
      $region19: #{tpu_custom_call.1} parent=11 // pred_region
        _
      $region20: #{tpu_custom_call.1} parent=11 // pred_fallthru
        _
      // Predicated region
      $region21: #{tpu_custom_call.1} parent=11 // pred_check
        %p160 = pneg %p111
      $region22: #{tpu_custom_call.1} parent=11 // pred_check_branch
        %162 = sbr.rel (%p160) target = $region24
      $region23: #{tpu_custom_call.1} parent=11 // pred_region
        _
      $region24: #{tpu_custom_call.1} parent=11 // pred_fallthru
        _
    $region12: #{tpu_custom_call.1} parent=5 // pred_fallthru
      _
    %p163 = scmp.lt.s32.totalorder %s10, 4
    // Predicated region
    $region25: #{tpu_custom_call.1} parent=5 // pred_check
      %p164 = pneg %p163
    $region26: #{tpu_custom_call.1} parent=5 // pred_check_branch
      %166 = sbr.rel (%p164) target = $region28
    $region27: #{tpu_custom_call.1} parent=5 // pred_region
      // Predicated region
      $region29: #{tpu_custom_call.1} parent=27 // pred_check
        %p167 = pneg %p42
      $region30: #{tpu_custom_call.1} parent=27 // pred_check_branch
        %169 = sbr.rel (%p167) target = $region32
      $region31: #{tpu_custom_call.1} parent=27 // pred_region
        %p170 = scmp.lt.s32.totalorder %s17, 1
        %s171 = scalar_select %p170, %s17, 1
        %s172 = smul.addr %s171, 54
        %s173 = smul.addr %s172, 4
        %s174 = scalar_lea.vmem %s0, %s173
      $region32: #{tpu_custom_call.1} parent=27 // pred_fallthru
        _
    $region28: #{tpu_custom_call.1} parent=5 // pred_fallthru
      _
    %p175 = scmp.le.s32.totalorder 1, %s10
    %p176 = scmp.lt.s32.totalorder %s10, 5
    %p177 = pnand %p175, %p176
    %p178 = pneg %p177
    // Predicated region
    $region33: #{tpu_custom_call.1} parent=5 // pred_check
      _
    $region34: #{tpu_custom_call.1} parent=5 // pred_check_branch
      %180 = sbr.rel (%p177) target = $region36
    $region35: #{tpu_custom_call.1} parent=5 // pred_region
      %s181 = ssub.s32 %s10, 1
      %p182 = scmp.lt.s32.totalorder %s19, 1
      %s183 = scalar_select %p182, %s19, 1
      %s184 = smul.addr %s183, 54
      %s185 = smul.addr %s184, 4
      %s186 = scalar_lea.vmem %s0, %s185
      %p187 = pneg %p48
      %p188 = pneg %p45
      %p189 = pneg %p69
      %p190 = pneg %p66
      %p191 = pneg %p90
      %p192 = pneg %p87
      %p193 = pneg %p111
      %p194 = pneg %p108
      %p195 = pneg %p139
      %p196 = pneg %p136
      %s197 = smul.u32 8, %s20
      %p198 = scmp.lt.s32.totalorder %s19, 1
      %s199 = scalar_select %p198, %s19, 1
      %p200 = scmp.lt.s32.totalorder %s197, 15
      %s201 = scalar_select %p200, %s197, 15
      %s202 = smul.addr %s201, 2
      %s203 = smul.addr %s199, 32
      %s204 = sadd.s32 %s202, %s203
      %s205 = smul.addr %s204, 8
      %s206 = scalar_lea.vmem %s4, %s205
      %p207 = scmp.lt.s32.totalorder %s19, 1
      %s208 = scalar_select %p207, %s19, 1
      %s209 = smul.addr %s208, 54
      %s210 = smul.addr %s209, 4
      %s211 = scalar_lea.vmem %s0, %s210
      %s212 = smul.u32 8, %s20
      %p213 = scmp.lt.s32.totalorder %s19, 1
      %s214 = scalar_select %p213, %s19, 1
      %p215 = scmp.lt.s32.totalorder %s212, 15
      %s216 = scalar_select %p215, %s212, 15
      %s217 = smul.addr %s216, 2
      %s218 = smul.addr %s214, 32
      %s219 = sadd.s32 %s217, %s218
      %s220 = smul.addr %s219, 8
      %s221 = scalar_lea.vmem %s4, %s220
      %s222 = smul.u32 8, %s20
      %s224 = smul.u32 %s20, 8
      %s225 = smul.u32 %s224, 3
      %s226 = smul.addr %s225, 4
      %s227 = scalar_lea.vmem %s211, %s226
      %v228 = vld [vmem:[%s227] sm:$0xf]
      %v229 = vld [vmem:[%s227 + $0x4] sm:$0xf]
      %v230 = vld [vmem:[%s227 + $0xc] sm:$0xf]
      %v231 = vld [vmem:[%s227 + $0x10] sm:$0xf]
      %v232 = vld [vmem:[%s227 + $0x18] sm:$0xf]
      %v233 = vld [vmem:[%s227 + $0x1c] sm:$0xf]
      %v234 = vld [vmem:[%s227 + $0x24] sm:$0xf]
      %v235 = vld [vmem:[%s227 + $0x28] sm:$0xf]
      %v236 = vld [vmem:[%s227 + $0x30] sm:$0xf]
      %v237 = vld [vmem:[%s227 + $0x34] sm:$0xf]
      %v238 = vld [vmem:[%s227 + $0x3c] sm:$0xf]
      %v239 = vld [vmem:[%s227 + $0x40] sm:$0xf]
      %v240 = vld [vmem:[%s227 + $0x48] sm:$0xf]
      %v241 = vld [vmem:[%s227 + $0x4c] sm:$0xf]
      %v242 = vld [vmem:[%s227 + $0x54] sm:$0xf]
      %v243 = vld [vmem:[%s227 + $0x58] sm:$0xf]
      %v244 = vld [vmem:[%s1] sm:$0x3]
      %v245 = vld [vmem:[%s227 + $0x8] sm:$0x1]
      %v246 = vld [vmem:[%s227 + $0x14] sm:$0x1]
      %v247 = vld [vmem:[%s227 + $0x20] sm:$0x1]
      %v248 = vld [vmem:[%s227 + $0x2c] sm:$0x1]
      %v249 = vld [vmem:[%s227 + $0x38] sm:$0x1]
      %v250 = vld [vmem:[%s227 + $0x44] sm:$0x1]
      %v251 = vld [vmem:[%s227 + $0x50] sm:$0x1]
      %v252 = vld [vmem:[%s227 + $0x5c] sm:$0x1]
      %vm253 = vsmask.f32 3328
      %vm254 = vsmask.f32 7440
      %vm255 = vmor %vm253, %vm254
      %v257 = vshrl.u32 %v228, 16
      %v259 = vrot.slane %v257, 4
      %v260 = vshll.u32 %v228, 16
      %v262 = vrot.slane %v260, 5
      %v263 = vor.u32 %v259, %v262
      %v264 = vrot.slane %v263, 4
      %v266 = vshll.u32 %v229, 16
      %v268 = vrot.slane %v266, 5
      %v269 = vsel %vm255, %v264, %v268
      %v270 = vshrl.u32 %v229, 16
      %v272 = vrot.slane %v270, 4
      %v273 = vor.u32 %v272, %v268
      %v274 = vrot.slane %v273, 4
      %v276 = vshll.u32 %v245, 16
      %v278 = vrot.slane %v276, 5
      %v279 = vsel %vm255, %v274, %v278
      %v281 = vshrl.u32 %v230, 16
      %v283 = vrot.slane %v281, 4
      %v284 = vshll.u32 %v230, 16
      %v286 = vrot.slane %v284, 5
      %v287 = vor.u32 %v283, %v286
      %v288 = vrot.slane %v287, 4
      %v290 = vshll.u32 %v231, 16
      %v292 = vrot.slane %v290, 5
      %v293 = vsel %vm255, %v288, %v292
      %v294 = vshrl.u32 %v231, 16
      %v296 = vrot.slane %v294, 4
      %v297 = vor.u32 %v296, %v292
      %v298 = vrot.slane %v297, 4
      %v300 = vshll.u32 %v246, 16
      %v302 = vrot.slane %v300, 5
      %v303 = vsel %vm255, %v298, %v302
      %v305 = vshrl.u32 %v232, 16
      %v307 = vrot.slane %v305, 4
      %v308 = vshll.u32 %v232, 16
      %v310 = vrot.slane %v308, 5
      %v311 = vor.u32 %v307, %v310
      %v312 = vrot.slane %v311, 4
      %v314 = vshll.u32 %v233, 16
      %v316 = vrot.slane %v314, 5
      %v317 = vsel %vm255, %v312, %v316
      %v318 = vshrl.u32 %v233, 16
      %v320 = vrot.slane %v318, 4
      %v321 = vor.u32 %v320, %v316
      %v322 = vrot.slane %v321, 4
      %v324 = vshll.u32 %v247, 16
      %v326 = vrot.slane %v324, 5
      %v327 = vsel %vm255, %v322, %v326
      %v329 = vshrl.u32 %v234, 16
      %v331 = vrot.slane %v329, 4
      %v332 = vshll.u32 %v234, 16
      %v334 = vrot.slane %v332, 5
      %v335 = vor.u32 %v331, %v334
      %v336 = vrot.slane %v335, 4
      %v338 = vshll.u32 %v235, 16
      %v340 = vrot.slane %v338, 5
      %v341 = vsel %vm255, %v336, %v340
      %v342 = vshrl.u32 %v235, 16
      %v344 = vrot.slane %v342, 4
      %v345 = vor.u32 %v344, %v340
      %v346 = vrot.slane %v345, 4
      %v348 = vshll.u32 %v248, 16
      %v350 = vrot.slane %v348, 5
      %v351 = vsel %vm255, %v346, %v350
      %v353 = vshrl.u32 %v236, 16
      %v355 = vrot.slane %v353, 4
      %v356 = vshll.u32 %v236, 16
      %v358 = vrot.slane %v356, 5
      %v359 = vor.u32 %v355, %v358
      %v360 = vrot.slane %v359, 4
      %v362 = vshll.u32 %v237, 16
      %v364 = vrot.slane %v362, 5
      %v365 = vsel %vm255, %v360, %v364
      %v366 = vshrl.u32 %v237, 16
      %v368 = vrot.slane %v366, 4
      %v369 = vor.u32 %v368, %v364
      %v370 = vrot.slane %v369, 4
      %v372 = vshll.u32 %v249, 16
      %v374 = vrot.slane %v372, 5
      %v375 = vsel %vm255, %v370, %v374
      %v377 = vshrl.u32 %v238, 16
      %v379 = vrot.slane %v377, 4
      %v380 = vshll.u32 %v238, 16
      %v382 = vrot.slane %v380, 5
      %v383 = vor.u32 %v379, %v382
      %v384 = vrot.slane %v383, 4
      %v386 = vshll.u32 %v239, 16
      %v388 = vrot.slane %v386, 5
      %v389 = vsel %vm255, %v384, %v388
      %v390 = vshrl.u32 %v239, 16
      %v392 = vrot.slane %v390, 4
      %v393 = vor.u32 %v392, %v388
      %v394 = vrot.slane %v393, 4
      %v396 = vshll.u32 %v250, 16
      %v398 = vrot.slane %v396, 5
      %v399 = vsel %vm255, %v394, %v398
      %v401 = vshrl.u32 %v240, 16
      %v403 = vrot.slane %v401, 4
      %v404 = vshll.u32 %v240, 16
      %v406 = vrot.slane %v404, 5
      %v407 = vor.u32 %v403, %v406
      %v408 = vrot.slane %v407, 4
      %v410 = vshll.u32 %v241, 16
      %v412 = vrot.slane %v410, 5
      %v413 = vsel %vm255, %v408, %v412
      %v414 = vshrl.u32 %v241, 16
      %v416 = vrot.slane %v414, 4
      %v417 = vor.u32 %v416, %v412
      %v418 = vrot.slane %v417, 4
      %v420 = vshll.u32 %v251, 16
      %v422 = vrot.slane %v420, 5
      %v423 = vsel %vm255, %v418, %v422
      %v425 = vshrl.u32 %v242, 16
      %v427 = vrot.slane %v425, 4
      %v428 = vshll.u32 %v242, 16
      %v430 = vrot.slane %v428, 5
      %v431 = vor.u32 %v427, %v430
      %v432 = vrot.slane %v431, 4
      %v434 = vshll.u32 %v243, 16
      %v436 = vrot.slane %v434, 5
      %v437 = vsel %vm255, %v432, %v436
      %v438 = vshrl.u32 %v243, 16
      %v440 = vrot.slane %v438, 4
      %v441 = vor.u32 %v440, %v436
      %v442 = vrot.slane %v441, 4
      %v444 = vshll.u32 %v252, 16
      %v446 = vrot.slane %v444, 5
      %v447 = vsel %vm255, %v442, %v446
      %s448 = scalar_lea.vmem %s1, 2
      %v449 = vld [vmem:[%s448] sm:$0x3]
      %v450 = vunpack.c.l.b16 %v269
      %v451 = vunpack.c.l.b16 %v279
      %v452 = vunpack.c.l.b16 %v293
      %v453 = vunpack.c.l.b16 %v303
      %v454 = vunpack.c.l.b16 %v317
      %v455 = vunpack.c.l.b16 %v327
      %v456 = vunpack.c.l.b16 %v341
      %v457 = vunpack.c.l.b16 %v351
      %v458 = vunpack.c.l.b16 %v365
      %v459 = vunpack.c.l.b16 %v375
      %v460 = vunpack.c.l.b16 %v389
      %v461 = vunpack.c.l.b16 %v399
      %v462 = vunpack.c.l.b16 %v413
      %v463 = vunpack.c.l.b16 %v423
      %v464 = vunpack.c.l.b16 %v437
      %v465 = vunpack.c.l.b16 %v447
      %v466 = vpack.c.b16 %v451, %v450
      %v467 = vpack.c.b16 %v453, %v452
      %v468 = vpack.c.b16 %v455, %v454
      %v469 = vpack.c.b16 %v457, %v456
      %v470 = vpack.c.b16 %v459, %v458
      %v471 = vpack.c.b16 %v461, %v460
      %v472 = vpack.c.b16 %v463, %v462
      %v473 = vpack.c.b16 %v465, %v464
      %vm474 = vcmask 31744
      %v476 = vsel %vm474, %v466, 0
      %v479 = vsel %vm474, %v467, 0
      %v482 = vsel %vm474, %v468, 0
      %v485 = vsel %vm474, %v469, 0
      %v488 = vsel %vm474, %v470, 0
      %v491 = vsel %vm474, %v471, 0
      %v494 = vsel %vm474, %v472, 0
      %v497 = vsel %vm474, %v473, 0
      %vm499 = vcmask 1041408
      %v501 = vsel %vm499, %v449, 0
      %503 = vmatprep.subr.bf16.mxu0 0
      %504 = vmatpush1.bf16.msra.mxu0 0
      %505 = vmatprep.subr.bf16.mxu0 0
      %506 = vmatpush1.bf16.msra.mxu0 0
      %507 = vmatprep.subr.bf16.mxu0 0
      %508 = vmatpush1.bf16.msra.mxu0 0
      %509 = vmatprep.subr.bf16.mxu0 0
      %510 = vmatpush1.bf16.msra.mxu0 0
      %511 = vmatprep.subr.bf16.mxu0 0
      %512 = vmatpush1.bf16.msra.mxu0 0
      %513 = vmatprep.subr.bf16.mxu0 0
      %514 = vmatpush1.bf16.msra.mxu0 0
      %515 = vmatprep.subr.bf16.mxu0 0
      %516 = vmatpush1.bf16.msra.mxu0 0
      %517 = vmatprep.subr.bf16.mxu0 0
      %518 = vmatpush1.bf16.msra.mxu0 %v501
      %519 = vmatprep.subr.bf16.mxu0 0
      %520 = vmatpush2.bf16.msra.mxu0 0
      %521 = vmatprep.subr.bf16.mxu0 0
      %522 = vmatpush2.bf16.msra.mxu0 0
      %523 = vmatprep.subr.bf16.mxu0 0
      %524 = vmatpush2.bf16.msra.mxu0 0
      %525 = vmatprep.subr.bf16.mxu0 0
      %526 = vmatpush2.bf16.msra.mxu0 0
      %527 = vmatprep.subr.bf16.mxu0 0
      %528 = vmatpush2.bf16.msra.mxu0 0
      %529 = vmatprep.subr.bf16.mxu0 0
      %530 = vmatpush2.bf16.msra.mxu0 0
      %531 = vmatprep.subr.bf16.mxu0 0
      %532 = vmatpush2.bf16.msra.mxu0 0
      %533 = vmatprep.subr.bf16.mxu0 0
      %534 = vmatpush2.bf16.msra.mxu0 0
      %535 = vmatprep.mubr.bf16.mxu0 0
      %536 = vmatmul.mubr.bf16.gmra.mxu0 %v476
      %v537 = vpop.f32.mrf.mxu0
      %v538 = vadd.f32 0.0, %v537
      %v539 = vpop.f32.mrf.mxu0
      %v540 = vpop.f32.mrf.mxu0
      %v541 = vadd.f32 0.0, %v540
      %v542 = vpop.f32.mrf.mxu0
      %543 = vmatprep.mubr.bf16.mxu0 0
      %544 = vmatmul.mubr.bf16.gmra.mxu0 %v479
      %v545 = vpop.f32.mrf.mxu0
      %v546 = vadd.f32 0.0, %v545
      %v547 = vpop.f32.mrf.mxu0
      %v548 = vpop.f32.mrf.mxu0
      %v549 = vadd.f32 0.0, %v548
      %v550 = vpop.f32.mrf.mxu0
      %551 = vmatprep.mubr.bf16.mxu0 0
      %552 = vmatmul.mubr.bf16.gmra.mxu0 %v482
      %v553 = vpop.f32.mrf.mxu0
      %v554 = vadd.f32 0.0, %v553
      %v555 = vpop.f32.mrf.mxu0
      %v556 = vpop.f32.mrf.mxu0
      %v557 = vadd.f32 0.0, %v556
      %v558 = vpop.f32.mrf.mxu0
      %559 = vmatprep.mubr.bf16.mxu0 0
      %560 = vmatmul.mubr.bf16.gmra.mxu0 %v485
      %v561 = vpop.f32.mrf.mxu0
      %v562 = vadd.f32 0.0, %v561
      %v563 = vpop.f32.mrf.mxu0
      %v564 = vpop.f32.mrf.mxu0
      %v565 = vadd.f32 0.0, %v564
      %v566 = vpop.f32.mrf.mxu0
      %567 = vmatprep.mubr.bf16.mxu0 0
      %568 = vmatmul.mubr.bf16.gmra.mxu0 %v488
      %v569 = vpop.f32.mrf.mxu0
      %v570 = vadd.f32 0.0, %v569
      %v571 = vpop.f32.mrf.mxu0
      %v572 = vpop.f32.mrf.mxu0
      %v573 = vadd.f32 0.0, %v572
      %v574 = vpop.f32.mrf.mxu0
      %575 = vmatprep.mubr.bf16.mxu0 0
      %576 = vmatmul.mubr.bf16.gmra.mxu0 %v491
      %v577 = vpop.f32.mrf.mxu0
      %v578 = vadd.f32 0.0, %v577
      %v579 = vpop.f32.mrf.mxu0
      %v580 = vpop.f32.mrf.mxu0
      %v581 = vadd.f32 0.0, %v580
      %v582 = vpop.f32.mrf.mxu0
      %583 = vmatprep.mubr.bf16.mxu0 0
      %584 = vmatmul.mubr.bf16.gmra.mxu0 %v494
      %v585 = vpop.f32.mrf.mxu0
      %v586 = vadd.f32 0.0, %v585
      %v587 = vpop.f32.mrf.mxu0
      %v588 = vpop.f32.mrf.mxu0
      %v589 = vadd.f32 0.0, %v588
      %v590 = vpop.f32.mrf.mxu0
      %591 = vmatprep.mubr.bf16.mxu0 0
      %592 = vmatmul.mubr.bf16.gmra.mxu0 %v497
      %v593 = vpop.f32.mrf.mxu0
      %v594 = vadd.f32 0.0, %v593
      %v595 = vpop.f32.mrf.mxu0
      %v596 = vpop.f32.mrf.mxu0
      %v597 = vadd.f32 0.0, %v596
      %v598 = vpop.f32.mrf.mxu0
      %599 = vdwg.mxu0
      %v616 = vunpack.c.l.b16 %v228
      %v617 = vunpack.c.l.b16 %v229
      %v618 = vunpack.c.l.b16 %v230
      %v619 = vunpack.c.l.b16 %v231
      %v620 = vunpack.c.l.b16 %v232
      %v621 = vunpack.c.l.b16 %v233
      %v622 = vunpack.c.l.b16 %v234
      %v623 = vunpack.c.l.b16 %v235
      %v624 = vunpack.c.l.b16 %v236
      %v625 = vunpack.c.l.b16 %v237
      %v626 = vunpack.c.l.b16 %v238
      %v627 = vunpack.c.l.b16 %v239
      %v628 = vunpack.c.l.b16 %v240
      %v629 = vunpack.c.l.b16 %v241
      %v630 = vunpack.c.l.b16 %v242
      %v631 = vunpack.c.l.b16 %v243
      %v632 = vpack.c.b16 %v617, %v616
      %v633 = vpack.c.b16 %v619, %v618
      %v634 = vpack.c.b16 %v621, %v620
      %v635 = vpack.c.b16 %v623, %v622
      %v636 = vpack.c.b16 %v625, %v624
      %v637 = vpack.c.b16 %v627, %v626
      %v638 = vpack.c.b16 %v629, %v628
      %v639 = vpack.c.b16 %v631, %v630
      %v641 = vsel %vm474, %v632, 0
      %v644 = vsel %vm474, %v633, 0
      %v647 = vsel %vm474, %v634, 0
      %v650 = vsel %vm474, %v635, 0
      %v653 = vsel %vm474, %v636, 0
      %v656 = vsel %vm474, %v637, 0
      %v659 = vsel %vm474, %v638, 0
      %v662 = vsel %vm474, %v639, 0
      %v665 = vsel %vm499, %v244, 0
      %667 = vmatprep.subr.bf16.mxu0 0
      %668 = vmatpush1.bf16.msra.mxu0 0
      %669 = vmatprep.subr.bf16.mxu0 0
      %670 = vmatpush1.bf16.msra.mxu0 0
      %671 = vmatprep.subr.bf16.mxu0 0
      %672 = vmatpush1.bf16.msra.mxu0 0
      %673 = vmatprep.subr.bf16.mxu0 0
      %674 = vmatpush1.bf16.msra.mxu0 0
      %675 = vmatprep.subr.bf16.mxu0 0
      %676 = vmatpush1.bf16.msra.mxu0 0
      %677 = vmatprep.subr.bf16.mxu0 0
      %678 = vmatpush1.bf16.msra.mxu0 0
      %679 = vmatprep.subr.bf16.mxu0 0
      %680 = vmatpush1.bf16.msra.mxu0 0
      %681 = vmatprep.subr.bf16.mxu0 0
      %682 = vmatpush1.bf16.msra.mxu0 %v665
      %683 = vmatprep.subr.bf16.mxu0 0
      %684 = vmatpush2.bf16.msra.mxu0 0
      %685 = vmatprep.subr.bf16.mxu0 0
      %686 = vmatpush2.bf16.msra.mxu0 0
      %687 = vmatprep.subr.bf16.mxu0 0
      %688 = vmatpush2.bf16.msra.mxu0 0
      %689 = vmatprep.subr.bf16.mxu0 0
      %690 = vmatpush2.bf16.msra.mxu0 0
      %691 = vmatprep.subr.bf16.mxu0 0
      %692 = vmatpush2.bf16.msra.mxu0 0
      %693 = vmatprep.subr.bf16.mxu0 0
      %694 = vmatpush2.bf16.msra.mxu0 0
      %695 = vmatprep.subr.bf16.mxu0 0
      %696 = vmatpush2.bf16.msra.mxu0 0
      %697 = vmatprep.subr.bf16.mxu0 0
      %698 = vmatpush2.bf16.msra.mxu0 0
      %699 = vmatprep.mubr.bf16.mxu0 0
      %700 = vmatmul.mubr.bf16.gmra.mxu0 %v641
      %v701 = vpop.f32.mrf.mxu0
      %v702 = vadd.f32 %v538, %v701
      %v703 = vpop.f32.mrf.mxu0
      %v704 = vpop.f32.mrf.mxu0
      %v705 = vadd.f32 %v541, %v704
      %v706 = vpop.f32.mrf.mxu0
      %707 = vmatprep.mubr.bf16.mxu0 0
      %708 = vmatmul.mubr.bf16.gmra.mxu0 %v644
      %v709 = vpop.f32.mrf.mxu0
      %v710 = vadd.f32 %v546, %v709
      %v711 = vpop.f32.mrf.mxu0
      %v712 = vpop.f32.mrf.mxu0
      %v713 = vadd.f32 %v549, %v712
      %v714 = vpop.f32.mrf.mxu0
      %715 = vmatprep.mubr.bf16.mxu0 0
      %716 = vmatmul.mubr.bf16.gmra.mxu0 %v647
      %v717 = vpop.f32.mrf.mxu0
      %v718 = vadd.f32 %v554, %v717
      %v719 = vpop.f32.mrf.mxu0
      %v720 = vpop.f32.mrf.mxu0
      %v721 = vadd.f32 %v557, %v720
      %v722 = vpop.f32.mrf.mxu0
      %723 = vmatprep.mubr.bf16.mxu0 0
      %724 = vmatmul.mubr.bf16.gmra.mxu0 %v650
      %v725 = vpop.f32.mrf.mxu0
      %v726 = vadd.f32 %v562, %v725
      %v727 = vpop.f32.mrf.mxu0
      %v728 = vpop.f32.mrf.mxu0
      %v729 = vadd.f32 %v565, %v728
      %v730 = vpop.f32.mrf.mxu0
      %731 = vmatprep.mubr.bf16.mxu0 0
      %732 = vmatmul.mubr.bf16.gmra.mxu0 %v653
      %v733 = vpop.f32.mrf.mxu0
      %v734 = vadd.f32 %v570, %v733
      %v735 = vpop.f32.mrf.mxu0
      %v736 = vpop.f32.mrf.mxu0
      %v737 = vadd.f32 %v573, %v736
      %v738 = vpop.f32.mrf.mxu0
      %739 = vmatprep.mubr.bf16.mxu0 0
      %740 = vmatmul.mubr.bf16.gmra.mxu0 %v656
      %v741 = vpop.f32.mrf.mxu0
      %v742 = vadd.f32 %v578, %v741
      %v743 = vpop.f32.mrf.mxu0
      %v744 = vpop.f32.mrf.mxu0
      %v745 = vadd.f32 %v581, %v744
      %v746 = vpop.f32.mrf.mxu0
      %747 = vmatprep.mubr.bf16.mxu0 0
      %748 = vmatmul.mubr.bf16.gmra.mxu0 %v659
      %v749 = vpop.f32.mrf.mxu0
      %v750 = vadd.f32 %v586, %v749
      %v751 = vpop.f32.mrf.mxu0
      %v752 = vpop.f32.mrf.mxu0
      %v753 = vadd.f32 %v589, %v752
      %v754 = vpop.f32.mrf.mxu0
      %755 = vmatprep.mubr.bf16.mxu0 0
      %756 = vmatmul.mubr.bf16.gmra.mxu0 %v662
      %v757 = vpop.f32.mrf.mxu0
      %v758 = vadd.f32 %v594, %v757
      %v759 = vpop.f32.mrf.mxu0
      %v760 = vpop.f32.mrf.mxu0
      %v761 = vadd.f32 %v597, %v760
      %v762 = vpop.f32.mrf.mxu0
      %763 = vdwg.mxu0
      %v764 = vld [vmem:[%s227] sm:$0xe]
      %v765 = vld [vmem:[%s227 + $0xc] sm:$0xe]
      %v766 = vld [vmem:[%s227 + $0x18] sm:$0xe]
      %v767 = vld [vmem:[%s227 + $0x24] sm:$0xe]
      %v768 = vld [vmem:[%s227 + $0x30] sm:$0xe]
      %v769 = vld [vmem:[%s227 + $0x3c] sm:$0xe]
      %v770 = vld [vmem:[%s227 + $0x48] sm:$0xe]
      %v771 = vld [vmem:[%s227 + $0x54] sm:$0xe]
      %vm788 = vcmask 1042432
      %vm789 = vcmask 1046532
      %vm790 = vmor %vm788, %vm789
      %v791 = vrot.slane %v764, 5
      %v792 = vrot.slane %v791, 4
      %v793 = vrot.slane %v229, 5
      %v794 = vsel %vm790, %v792, %v793
      %v795 = vrot.slane %v793, 4
      %v796 = vrot.slane %v245, 5
      %v797 = vsel %vm790, %v795, %v796
      %v798 = vrot.slane %v765, 5
      %v799 = vrot.slane %v798, 4
      %v800 = vrot.slane %v231, 5
      %v801 = vsel %vm790, %v799, %v800
      %v802 = vrot.slane %v800, 4
      %v803 = vrot.slane %v246, 5
      %v804 = vsel %vm790, %v802, %v803
      %v805 = vrot.slane %v766, 5
      %v806 = vrot.slane %v805, 4
      %v807 = vrot.slane %v233, 5
      %v808 = vsel %vm790, %v806, %v807
      %v809 = vrot.slane %v807, 4
      %v810 = vrot.slane %v247, 5
      %v811 = vsel %vm790, %v809, %v810
      %v812 = vrot.slane %v767, 5
      %v813 = vrot.slane %v812, 4
      %v814 = vrot.slane %v235, 5
      %v815 = vsel %vm790, %v813, %v814
      %v816 = vrot.slane %v814, 4
      %v817 = vrot.slane %v248, 5
      %v818 = vsel %vm790, %v816, %v817
      %v819 = vrot.slane %v768, 5
      %v820 = vrot.slane %v819, 4
      %v821 = vrot.slane %v237, 5
      %v822 = vsel %vm790, %v820, %v821
      %v823 = vrot.slane %v821, 4
      %v824 = vrot.slane %v249, 5
      %v825 = vsel %vm790, %v823, %v824
      %v826 = vrot.slane %v769, 5
      %v827 = vrot.slane %v826, 4
      %v828 = vrot.slane %v239, 5
      %v829 = vsel %vm790, %v827, %v828
      %v830 = vrot.slane %v828, 4
      %v831 = vrot.slane %v250, 5
      %v832 = vsel %vm790, %v830, %v831
      %v833 = vrot.slane %v770, 5
      %v834 = vrot.slane %v833, 4
      %v835 = vrot.slane %v241, 5
      %v836 = vsel %vm790, %v834, %v835
      %v837 = vrot.slane %v835, 4
      %v838 = vrot.slane %v251, 5
      %v839 = vsel %vm790, %v837, %v838
      %v840 = vrot.slane %v771, 5
      %v841 = vrot.slane %v840, 4
      %v842 = vrot.slane %v243, 5
      %v843 = vsel %vm790, %v841, %v842
      %v844 = vrot.slane %v842, 4
      %v845 = vrot.slane %v252, 5
      %v846 = vsel %vm790, %v844, %v845
      %s847 = scalar_lea.vmem %s1, 4
      %v848 = vld [vmem:[%s847] sm:$0x3]
      %v849 = vunpack.c.l.b16 %v794
      %v850 = vunpack.c.l.b16 %v797
      %v851 = vunpack.c.l.b16 %v801
      %v852 = vunpack.c.l.b16 %v804
      %v853 = vunpack.c.l.b16 %v808
      %v854 = vunpack.c.l.b16 %v811
      %v855 = vunpack.c.l.b16 %v815
      %v856 = vunpack.c.l.b16 %v818
      %v857 = vunpack.c.l.b16 %v822
      %v858 = vunpack.c.l.b16 %v825
      %v859 = vunpack.c.l.b16 %v829
      %v860 = vunpack.c.l.b16 %v832
      %v861 = vunpack.c.l.b16 %v836
      %v862 = vunpack.c.l.b16 %v839
      %v863 = vunpack.c.l.b16 %v843
      %v864 = vunpack.c.l.b16 %v846
      %v865 = vpack.c.b16 %v850, %v849
      %v866 = vpack.c.b16 %v852, %v851
      %v867 = vpack.c.b16 %v854, %v853
      %v868 = vpack.c.b16 %v856, %v855
      %v869 = vpack.c.b16 %v858, %v857
      %v870 = vpack.c.b16 %v860, %v859
      %v871 = vpack.c.b16 %v862, %v861
      %v872 = vpack.c.b16 %v864, %v863
      %v874 = vsel %vm474, %v865, 0
      %v877 = vsel %vm474, %v866, 0
      %v880 = vsel %vm474, %v867, 0
      %v883 = vsel %vm474, %v868, 0
      %v886 = vsel %vm474, %v869, 0
      %v889 = vsel %vm474, %v870, 0
      %v892 = vsel %vm474, %v871, 0
      %v895 = vsel %vm474, %v872, 0
      %v898 = vsel %vm499, %v848, 0
      %900 = vmatprep.subr.bf16.mxu0 0
      %901 = vmatpush1.bf16.msra.mxu0 0
      %902 = vmatprep.subr.bf16.mxu0 0
      %903 = vmatpush1.bf16.msra.mxu0 0
      %904 = vmatprep.subr.bf16.mxu0 0
      %905 = vmatpush1.bf16.msra.mxu0 0
      %906 = vmatprep.subr.bf16.mxu0 0
      %907 = vmatpush1.bf16.msra.mxu0 0
      %908 = vmatprep.subr.bf16.mxu0 0
      %909 = vmatpush1.bf16.msra.mxu0 0
      %910 = vmatprep.subr.bf16.mxu0 0
      %911 = vmatpush1.bf16.msra.mxu0 0
      %912 = vmatprep.subr.bf16.mxu0 0
      %913 = vmatpush1.bf16.msra.mxu0 0
      %914 = vmatprep.subr.bf16.mxu0 0
      %915 = vmatpush1.bf16.msra.mxu0 %v898
      %916 = vmatprep.subr.bf16.mxu0 0
      %917 = vmatpush2.bf16.msra.mxu0 0
      %918 = vmatprep.subr.bf16.mxu0 0
      %919 = vmatpush2.bf16.msra.mxu0 0
      %920 = vmatprep.subr.bf16.mxu0 0
      %921 = vmatpush2.bf16.msra.mxu0 0
      %922 = vmatprep.subr.bf16.mxu0 0
      %923 = vmatpush2.bf16.msra.mxu0 0
      %924 = vmatprep.subr.bf16.mxu0 0
      %925 = vmatpush2.bf16.msra.mxu0 0
      %926 = vmatprep.subr.bf16.mxu0 0
      %927 = vmatpush2.bf16.msra.mxu0 0
      %928 = vmatprep.subr.bf16.mxu0 0
      %929 = vmatpush2.bf16.msra.mxu0 0
      %930 = vmatprep.subr.bf16.mxu0 0
      %931 = vmatpush2.bf16.msra.mxu0 0
      %932 = vmatprep.mubr.bf16.mxu0 0
      %933 = vmatmul.mubr.bf16.gmra.mxu0 %v874
      %v934 = vpop.f32.mrf.mxu0
      %v935 = vadd.f32 0.0, %v934
      %v936 = vpop.f32.mrf.mxu0
      %v937 = vpop.f32.mrf.mxu0
      %v938 = vadd.f32 0.0, %v937
      %v939 = vpop.f32.mrf.mxu0
      %940 = vmatprep.mubr.bf16.mxu0 0
      %941 = vmatmul.mubr.bf16.gmra.mxu0 %v877
      %v942 = vpop.f32.mrf.mxu0
      %v943 = vadd.f32 0.0, %v942
      %v944 = vpop.f32.mrf.mxu0
      %v945 = vpop.f32.mrf.mxu0
      %v946 = vadd.f32 0.0, %v945
      %v947 = vpop.f32.mrf.mxu0
      %948 = vmatprep.mubr.bf16.mxu0 0
      %949 = vmatmul.mubr.bf16.gmra.mxu0 %v880
      %v950 = vpop.f32.mrf.mxu0
      %v951 = vadd.f32 0.0, %v950
      %v952 = vpop.f32.mrf.mxu0
      %v953 = vpop.f32.mrf.mxu0
      %v954 = vadd.f32 0.0, %v953
      %v955 = vpop.f32.mrf.mxu0
      %956 = vmatprep.mubr.bf16.mxu0 0
      %957 = vmatmul.mubr.bf16.gmra.mxu0 %v883
      %v958 = vpop.f32.mrf.mxu0
      %v959 = vadd.f32 0.0, %v958
      %v960 = vpop.f32.mrf.mxu0
      %v961 = vpop.f32.mrf.mxu0
      %v962 = vadd.f32 0.0, %v961
      %v963 = vpop.f32.mrf.mxu0
      %964 = vmatprep.mubr.bf16.mxu0 0
      %965 = vmatmul.mubr.bf16.gmra.mxu0 %v886
      %v966 = vpop.f32.mrf.mxu0
      %v967 = vadd.f32 0.0, %v966
      %v968 = vpop.f32.mrf.mxu0
      %v969 = vpop.f32.mrf.mxu0
      %v970 = vadd.f32 0.0, %v969
      %v971 = vpop.f32.mrf.mxu0
      %972 = vmatprep.mubr.bf16.mxu0 0
      %973 = vmatmul.mubr.bf16.gmra.mxu0 %v889
      %v974 = vpop.f32.mrf.mxu0
      %v975 = vadd.f32 0.0, %v974
      %v976 = vpop.f32.mrf.mxu0
      %v977 = vpop.f32.mrf.mxu0
      %v978 = vadd.f32 0.0, %v977
      %v979 = vpop.f32.mrf.mxu0
      %980 = vmatprep.mubr.bf16.mxu0 0
      %981 = vmatmul.mubr.bf16.gmra.mxu0 %v892
      %v982 = vpop.f32.mrf.mxu0
      %v983 = vadd.f32 0.0, %v982
      %v984 = vpop.f32.mrf.mxu0
      %v985 = vpop.f32.mrf.mxu0
      %v986 = vadd.f32 0.0, %v985
      %v987 = vpop.f32.mrf.mxu0
      %988 = vmatprep.mubr.bf16.mxu0 0
      %989 = vmatmul.mubr.bf16.gmra.mxu0 %v895
      %v990 = vpop.f32.mrf.mxu0
      %v991 = vadd.f32 0.0, %v990
      %v992 = vpop.f32.mrf.mxu0
      %v993 = vpop.f32.mrf.mxu0
      %v994 = vadd.f32 0.0, %v993
      %v995 = vpop.f32.mrf.mxu0
      %996 = vdwg.mxu0
      %v997 = vadd.f32 %v702, %v935
      %v998 = vadd.f32 %v705, %v938
      %v999 = vadd.f32 %v710, %v943
      %v1000 = vadd.f32 %v713, %v946
      %v1001 = vadd.f32 %v718, %v951
      %v1002 = vadd.f32 %v721, %v954
      %v1003 = vadd.f32 %v726, %v959
      %v1004 = vadd.f32 %v729, %v962
      %v1005 = vadd.f32 %v734, %v967
      %v1006 = vadd.f32 %v737, %v970
      %v1007 = vadd.f32 %v742, %v975
      %v1008 = vadd.f32 %v745, %v978
      %v1009 = vadd.f32 %v750, %v983
      %v1010 = vadd.f32 %v753, %v986
      %v1011 = vadd.f32 %v758, %v991
      %v1012 = vadd.f32 %v761, %v994
      %s1013 = sadd.s32 %s224, 1
      %s1014 = smul.u32 %s1013, 3
      %s1015 = smul.addr %s1014, 4
      %s1016 = scalar_lea.vmem %s211, %s1015
      %v1017 = vld [vmem:[%s1016] sm:$0xf]
      %v1018 = vld [vmem:[%s1016 + $0x4] sm:$0xf]
      %v1019 = vld [vmem:[%s1016 + $0xc] sm:$0xf]
      %v1020 = vld [vmem:[%s1016 + $0x10] sm:$0xf]
      %v1021 = vld [vmem:[%s1016 + $0x18] sm:$0xf]
      %v1022 = vld [vmem:[%s1016 + $0x1c] sm:$0xf]
      %v1023 = vld [vmem:[%s1016 + $0x24] sm:$0xf]
      %v1024 = vld [vmem:[%s1016 + $0x28] sm:$0xf]
      %v1025 = vld [vmem:[%s1016 + $0x30] sm:$0xf]
      %v1026 = vld [vmem:[%s1016 + $0x34] sm:$0xf]
      %v1027 = vld [vmem:[%s1016 + $0x3c] sm:$0xf]
      %v1028 = vld [vmem:[%s1016 + $0x40] sm:$0xf]
      %v1029 = vld [vmem:[%s1016 + $0x48] sm:$0xf]
      %v1030 = vld [vmem:[%s1016 + $0x4c] sm:$0xf]
      %v1031 = vld [vmem:[%s1016 + $0x54] sm:$0xf]
      %v1032 = vld [vmem:[%s1016 + $0x58] sm:$0xf]
      %s1033 = scalar_lea.vmem %s1, 6
      %v1034 = vld [vmem:[%s1033] sm:$0x3]
      %v1051 = vunpack.c.l.b16 %v1017
      %v1052 = vunpack.c.l.b16 %v1018
      %v1053 = vunpack.c.l.b16 %v1019
      %v1054 = vunpack.c.l.b16 %v1020
      %v1055 = vunpack.c.l.b16 %v1021
      %v1056 = vunpack.c.l.b16 %v1022
      %v1057 = vunpack.c.l.b16 %v1023
      %v1058 = vunpack.c.l.b16 %v1024
      %v1059 = vunpack.c.l.b16 %v1025
      %v1060 = vunpack.c.l.b16 %v1026
      %v1061 = vunpack.c.l.b16 %v1027
      %v1062 = vunpack.c.l.b16 %v1028
      %v1063 = vunpack.c.l.b16 %v1029
      %v1064 = vunpack.c.l.b16 %v1030
      %v1065 = vunpack.c.l.b16 %v1031
      %v1066 = vunpack.c.l.b16 %v1032
      %v1067 = vpack.c.b16 %v1052, %v1051
      %v1068 = vpack.c.b16 %v1054, %v1053
      %v1069 = vpack.c.b16 %v1056, %v1055
      %v1070 = vpack.c.b16 %v1058, %v1057
      %v1071 = vpack.c.b16 %v1060, %v1059
      %v1072 = vpack.c.b16 %v1062, %v1061
      %v1073 = vpack.c.b16 %v1064, %v1063
      %v1074 = vpack.c.b16 %v1066, %v1065
      %v1076 = vsel %vm474, %v1067, 0
      %v1079 = vsel %vm474, %v1068, 0
      %v1082 = vsel %vm474, %v1069, 0
      %v1085 = vsel %vm474, %v1070, 0
      %v1088 = vsel %vm474, %v1071, 0
      %v1091 = vsel %vm474, %v1072, 0
      %v1094 = vsel %vm474, %v1073, 0
      %v1097 = vsel %vm474, %v1074, 0
      %v1100 = vsel %vm499, %v1034, 0
      %1102 = vmatprep.subr.bf16.mxu0 0
      %1103 = vmatpush1.bf16.msra.mxu0 0
      %1104 = vmatprep.subr.bf16.mxu0 0
      %1105 = vmatpush1.bf16.msra.mxu0 0
      %1106 = vmatprep.subr.bf16.mxu0 0
      %1107 = vmatpush1.bf16.msra.mxu0 0
      %1108 = vmatprep.subr.bf16.mxu0 0
      %1109 = vmatpush1.bf16.msra.mxu0 0
      %1110 = vmatprep.subr.bf16.mxu0 0
      %1111 = vmatpush1.bf16.msra.mxu0 0
      %1112 = vmatprep.subr.bf16.mxu0 0
      %1113 = vmatpush1.bf16.msra.mxu0 0
      %1114 = vmatprep.subr.bf16.mxu0 0
      %1115 = vmatpush1.bf16.msra.mxu0 0
      %1116 = vmatprep.subr.bf16.mxu0 0
      %1117 = vmatpush1.bf16.msra.mxu0 %v1100
      %1118 = vmatprep.subr.bf16.mxu0 0
      %1119 = vmatpush2.bf16.msra.mxu0 0
      %1120 = vmatprep.subr.bf16.mxu0 0
      %1121 = vmatpush2.bf16.msra.mxu0 0
      %1122 = vmatprep.subr.bf16.mxu0 0
      %1123 = vmatpush2.bf16.msra.mxu0 0
      %1124 = vmatprep.subr.bf16.mxu0 0
      %1125 = vmatpush2.bf16.msra.mxu0 0
      %1126 = vmatprep.subr.bf16.mxu0 0
      %1127 = vmatpush2.bf16.msra.mxu0 0
      %1128 = vmatprep.subr.bf16.mxu0 0
      %1129 = vmatpush2.bf16.msra.mxu0 0
      %1130 = vmatprep.subr.bf16.mxu0 0
      %1131 = vmatpush2.bf16.msra.mxu0 0
      %1132 = vmatprep.subr.bf16.mxu0 0
      %1133 = vmatpush2.bf16.msra.mxu0 0
      %1134 = vmatprep.mubr.bf16.mxu0 0
      %1135 = vmatmul.mubr.bf16.gmra.mxu0 %v1076
      %v1136 = vpop.f32.mrf.mxu0
      %v1137 = vadd.f32 0.0, %v1136
      %v1138 = vpop.f32.mrf.mxu0
      %v1139 = vpop.f32.mrf.mxu0
      %v1140 = vadd.f32 0.0, %v1139
      %v1141 = vpop.f32.mrf.mxu0
      %1142 = vmatprep.mubr.bf16.mxu0 0
      %1143 = vmatmul.mubr.bf16.gmra.mxu0 %v1079
      %v1144 = vpop.f32.mrf.mxu0
      %v1145 = vadd.f32 0.0, %v1144
      %v1146 = vpop.f32.mrf.mxu0
      %v1147 = vpop.f32.mrf.mxu0
      %v1148 = vadd.f32 0.0, %v1147
      %v1149 = vpop.f32.mrf.mxu0
      %1150 = vmatprep.mubr.bf16.mxu0 0
      %1151 = vmatmul.mubr.bf16.gmra.mxu0 %v1082
      %v1152 = vpop.f32.mrf.mxu0
      %v1153 = vadd.f32 0.0, %v1152
      %v1154 = vpop.f32.mrf.mxu0
      %v1155 = vpop.f32.mrf.mxu0
      %v1156 = vadd.f32 0.0, %v1155
      %v1157 = vpop.f32.mrf.mxu0
      %1158 = vmatprep.mubr.bf16.mxu0 0
      %1159 = vmatmul.mubr.bf16.gmra.mxu0 %v1085
      %v1160 = vpop.f32.mrf.mxu0
      %v1161 = vadd.f32 0.0, %v1160
      %v1162 = vpop.f32.mrf.mxu0
      %v1163 = vpop.f32.mrf.mxu0
      %v1164 = vadd.f32 0.0, %v1163
      %v1165 = vpop.f32.mrf.mxu0
      %1166 = vmatprep.mubr.bf16.mxu0 0
      %1167 = vmatmul.mubr.bf16.gmra.mxu0 %v1088
      %v1168 = vpop.f32.mrf.mxu0
      %v1169 = vadd.f32 0.0, %v1168
      %v1170 = vpop.f32.mrf.mxu0
      %v1171 = vpop.f32.mrf.mxu0
      %v1172 = vadd.f32 0.0, %v1171
      %v1173 = vpop.f32.mrf.mxu0
      %1174 = vmatprep.mubr.bf16.mxu0 0
      %1175 = vmatmul.mubr.bf16.gmra.mxu0 %v1091
      %v1176 = vpop.f32.mrf.mxu0
      %v1177 = vadd.f32 0.0, %v1176
      %v1178 = vpop.f32.mrf.mxu0
      %v1179 = vpop.f32.mrf.mxu0
      %v1180 = vadd.f32 0.0, %v1179
      %v1181 = vpop.f32.mrf.mxu0
      %1182 = vmatprep.mubr.bf16.mxu0 0
      %1183 = vmatmul.mubr.bf16.gmra.mxu0 %v1094
      %v1184 = vpop.f32.mrf.mxu0
      %v1185 = vadd.f32 0.0, %v1184
      %v1186 = vpop.f32.mrf.mxu0
      %v1187 = vpop.f32.mrf.mxu0
      %v1188 = vadd.f32 0.0, %v1187
      %v1189 = vpop.f32.mrf.mxu0
      %1190 = vmatprep.mubr.bf16.mxu0 0
      %1191 = vmatmul.mubr.bf16.gmra.mxu0 %v1097
      %v1192 = vpop.f32.mrf.mxu0
      %v1193 = vadd.f32 0.0, %v1192
      %v1194 = vpop.f32.mrf.mxu0
      %v1195 = vpop.f32.mrf.mxu0
      %v1196 = vadd.f32 0.0, %v1195
      %v1197 = vpop.f32.mrf.mxu0
      %1198 = vdwg.mxu0
      %v1199 = vadd.f32 %v997, %v1137
      %v1200 = vadd.f32 %v998, %v1140
      %v1201 = vadd.f32 %v999, %v1145
      %v1202 = vadd.f32 %v1000, %v1148
      %v1203 = vadd.f32 %v1001, %v1153
      %v1204 = vadd.f32 %v1002, %v1156
      %v1205 = vadd.f32 %v1003, %v1161
      %v1206 = vadd.f32 %v1004, %v1164
      %v1207 = vadd.f32 %v1005, %v1169
      %v1208 = vadd.f32 %v1006, %v1172
      %v1209 = vadd.f32 %v1007, %v1177
      %v1210 = vadd.f32 %v1008, %v1180
      %v1211 = vadd.f32 %v1009, %v1185
      %v1212 = vadd.f32 %v1010, %v1188
      %v1213 = vadd.f32 %v1011, %v1193
      %v1214 = vadd.f32 %v1012, %v1196
      %v1215 = vld [vmem:[%s1016] sm:$0xf]
      %v1216 = vld [vmem:[%s1016 + $0x4] sm:$0xf]
      %v1217 = vld [vmem:[%s1016 + $0x8] sm:$0x1]
      %v1218 = vld [vmem:[%s1016 + $0xc] sm:$0xf]
      %v1219 = vld [vmem:[%s1016 + $0x10] sm:$0xf]
      %v1220 = vld [vmem:[%s1016 + $0x14] sm:$0x1]
      %v1221 = vld [vmem:[%s1016 + $0x18] sm:$0xf]
      %v1222 = vld [vmem:[%s1016 + $0x1c] sm:$0xf]
      %v1223 = vld [vmem:[%s1016 + $0x20] sm:$0x1]
      %v1224 = vld [vmem:[%s1016 + $0x24] sm:$0xf]
      %v1225 = vld [vmem:[%s1016 + $0x28] sm:$0xf]
      %v1226 = vld [vmem:[%s1016 + $0x2c] sm:$0x1]
      %v1227 = vld [vmem:[%s1016 + $0x30] sm:$0xf]
      %v1228 = vld [vmem:[%s1016 + $0x34] sm:$0xf]
      %v1229 = vld [vmem:[%s1016 + $0x38] sm:$0x1]
      %v1230 = vld [vmem:[%s1016 + $0x3c] sm:$0xf]
      %v1231 = vld [vmem:[%s1016 + $0x40] sm:$0xf]
      %v1232 = vld [vmem:[%s1016 + $0x44] sm:$0x1]
      %v1233 = vld [vmem:[%s1016 + $0x48] sm:$0xf]
      %v1234 = vld [vmem:[%s1016 + $0x4c] sm:$0xf]
      %v1235 = vld [vmem:[%s1016 + $0x50] sm:$0x1]
      %v1236 = vld [vmem:[%s1016 + $0x54] sm:$0xf]
      %v1237 = vld [vmem:[%s1016 + $0x58] sm:$0xf]
      %v1238 = vld [vmem:[%s1016 + $0x5c] sm:$0x1]
      %v1240 = vshrl.u32 %v1215, 16
      %v1242 = vrot.slane %v1240, 4
      %v1243 = vshll.u32 %v1215, 16
      %v1245 = vrot.slane %v1243, 5
      %v1246 = vor.u32 %v1242, %v1245
      %v1247 = vrot.slane %v1246, 4
      %v1249 = vshll.u32 %v1216, 16
      %v1251 = vrot.slane %v1249, 5
      %v1252 = vsel %vm255, %v1247, %v1251
      %v1253 = vshrl.u32 %v1216, 16
      %v1255 = vrot.slane %v1253, 4
      %v1256 = vor.u32 %v1255, %v1251
      %v1257 = vrot.slane %v1256, 4
      %v1259 = vshll.u32 %v1217, 16
      %v1261 = vrot.slane %v1259, 5
      %v1262 = vsel %vm255, %v1257, %v1261
      %v1264 = vshrl.u32 %v1218, 16
      %v1266 = vrot.slane %v1264, 4
      %v1267 = vshll.u32 %v1218, 16
      %v1269 = vrot.slane %v1267, 5
      %v1270 = vor.u32 %v1266, %v1269
      %v1271 = vrot.slane %v1270, 4
      %v1273 = vshll.u32 %v1219, 16
      %v1275 = vrot.slane %v1273, 5
      %v1276 = vsel %vm255, %v1271, %v1275
      %v1277 = vshrl.u32 %v1219, 16
      %v1279 = vrot.slane %v1277, 4
      %v1280 = vor.u32 %v1279, %v1275
      %v1281 = vrot.slane %v1280, 4
      %v1283 = vshll.u32 %v1220, 16
      %v1285 = vrot.slane %v1283, 5
      %v1286 = vsel %vm255, %v1281, %v1285
      %v1288 = vshrl.u32 %v1221, 16
      %v1290 = vrot.slane %v1288, 4
      %v1291 = vshll.u32 %v1221, 16
      %v1293 = vrot.slane %v1291, 5
      %v1294 = vor.u32 %v1290, %v1293
      %v1295 = vrot.slane %v1294, 4
      %v1297 = vshll.u32 %v1222, 16
      %v1299 = vrot.slane %v1297, 5
      %v1300 = vsel %vm255, %v1295, %v1299
      %v1301 = vshrl.u32 %v1222, 16
      %v1303 = vrot.slane %v1301, 4
      %v1304 = vor.u32 %v1303, %v1299
      %v1305 = vrot.slane %v1304, 4
      %v1307 = vshll.u32 %v1223, 16
      %v1309 = vrot.slane %v1307, 5
      %v1310 = vsel %vm255, %v1305, %v1309
      %v1312 = vshrl.u32 %v1224, 16
      %v1314 = vrot.slane %v1312, 4
      %v1315 = vshll.u32 %v1224, 16
      %v1317 = vrot.slane %v1315, 5
      %v1318 = vor.u32 %v1314, %v1317
      %v1319 = vrot.slane %v1318, 4
      %v1321 = vshll.u32 %v1225, 16
      %v1323 = vrot.slane %v1321, 5
      %v1324 = vsel %vm255, %v1319, %v1323
      %v1325 = vshrl.u32 %v1225, 16
      %v1327 = vrot.slane %v1325, 4
      %v1328 = vor.u32 %v1327, %v1323
      %v1329 = vrot.slane %v1328, 4
      %v1331 = vshll.u32 %v1226, 16
      %v1333 = vrot.slane %v1331, 5
      %v1334 = vsel %vm255, %v1329, %v1333
      %v1336 = vshrl.u32 %v1227, 16
      %v1338 = vrot.slane %v1336, 4
      %v1339 = vshll.u32 %v1227, 16
      %v1341 = vrot.slane %v1339, 5
      %v1342 = vor.u32 %v1338, %v1341
      %v1343 = vrot.slane %v1342, 4
      %v1345 = vshll.u32 %v1228, 16
      %v1347 = vrot.slane %v1345, 5
      %v1348 = vsel %vm255, %v1343, %v1347
      %v1349 = vshrl.u32 %v1228, 16
      %v1351 = vrot.slane %v1349, 4
      %v1352 = vor.u32 %v1351, %v1347
      %v1353 = vrot.slane %v1352, 4
      %v1355 = vshll.u32 %v1229, 16
      %v1357 = vrot.slane %v1355, 5
      %v1358 = vsel %vm255, %v1353, %v1357
      %v1360 = vshrl.u32 %v1230, 16
      %v1362 = vrot.slane %v1360, 4
      %v1363 = vshll.u32 %v1230, 16
      %v1365 = vrot.slane %v1363, 5
      %v1366 = vor.u32 %v1362, %v1365
      %v1367 = vrot.slane %v1366, 4
      %v1369 = vshll.u32 %v1231, 16
      %v1371 = vrot.slane %v1369, 5
      %v1372 = vsel %vm255, %v1367, %v1371
      %v1373 = vshrl.u32 %v1231, 16
      %v1375 = vrot.slane %v1373, 4
      %v1376 = vor.u32 %v1375, %v1371
      %v1377 = vrot.slane %v1376, 4
      %v1379 = vshll.u32 %v1232, 16
      %v1381 = vrot.slane %v1379, 5
      %v1382 = vsel %vm255, %v1377, %v1381
      %v1384 = vshrl.u32 %v1233, 16
      %v1386 = vrot.slane %v1384, 4
      %v1387 = vshll.u32 %v1233, 16
      %v1389 = vrot.slane %v1387, 5
      %v1390 = vor.u32 %v1386, %v1389
      %v1391 = vrot.slane %v1390, 4
      %v1393 = vshll.u32 %v1234, 16
      %v1395 = vrot.slane %v1393, 5
      %v1396 = vsel %vm255, %v1391, %v1395
      %v1397 = vshrl.u32 %v1234, 16
      %v1399 = vrot.slane %v1397, 4
      %v1400 = vor.u32 %v1399, %v1395
      %v1401 = vrot.slane %v1400, 4
      %v1403 = vshll.u32 %v1235, 16
      %v1405 = vrot.slane %v1403, 5
      %v1406 = vsel %vm255, %v1401, %v1405
      %v1408 = vshrl.u32 %v1236, 16
      %v1410 = vrot.slane %v1408, 4
      %v1411 = vshll.u32 %v1236, 16
      %v1413 = vrot.slane %v1411, 5
      %v1414 = vor.u32 %v1410, %v1413
      %v1415 = vrot.slane %v1414, 4
      %v1417 = vshll.u32 %v1237, 16
      %v1419 = vrot.slane %v1417, 5
      %v1420 = vsel %vm255, %v1415, %v1419
      %v1421 = vshrl.u32 %v1237, 16
      %v1423 = vrot.slane %v1421, 4
      %v1424 = vor.u32 %v1423, %v1419
      %v1425 = vrot.slane %v1424, 4
      %v1427 = vshll.u32 %v1238, 16
      %v1429 = vrot.slane %v1427, 5
      %v1430 = vsel %vm255, %v1425, %v1429
      %s1431 = scalar_lea.vmem %s1, 8
      %v1432 = vld [vmem:[%s1431] sm:$0x3]
      %v1433 = vunpack.c.l.b16 %v1252
      %v1434 = vunpack.c.l.b16 %v1262
      %v1435 = vunpack.c.l.b16 %v1276
      %v1436 = vunpack.c.l.b16 %v1286
      %v1437 = vunpack.c.l.b16 %v1300
      %v1438 = vunpack.c.l.b16 %v1310
      %v1439 = vunpack.c.l.b16 %v1324
      %v1440 = vunpack.c.l.b16 %v1334
      %v1441 = vunpack.c.l.b16 %v1348
      %v1442 = vunpack.c.l.b16 %v1358
      %v1443 = vunpack.c.l.b16 %v1372
      %v1444 = vunpack.c.l.b16 %v1382
      %v1445 = vunpack.c.l.b16 %v1396
      %v1446 = vunpack.c.l.b16 %v1406
      %v1447 = vunpack.c.l.b16 %v1420
      %v1448 = vunpack.c.l.b16 %v1430
      %v1449 = vpack.c.b16 %v1434, %v1433
      %v1450 = vpack.c.b16 %v1436, %v1435
      %v1451 = vpack.c.b16 %v1438, %v1437
      %v1452 = vpack.c.b16 %v1440, %v1439
      %v1453 = vpack.c.b16 %v1442, %v1441
      %v1454 = vpack.c.b16 %v1444, %v1443
      %v1455 = vpack.c.b16 %v1446, %v1445
      %v1456 = vpack.c.b16 %v1448, %v1447
      %v1458 = vsel %vm474, %v1449, 0
      %v1461 = vsel %vm474, %v1450, 0
      %v1464 = vsel %vm474, %v1451, 0
      %v1467 = vsel %vm474, %v1452, 0
      %v1470 = vsel %vm474, %v1453, 0
      %v1473 = vsel %vm474, %v1454, 0
      %v1476 = vsel %vm474, %v1455, 0
      %v1479 = vsel %vm474, %v1456, 0
      %v1482 = vsel %vm499, %v1432, 0
      %1484 = vmatprep.subr.bf16.mxu0 0
      %1485 = vmatpush1.bf16.msra.mxu0 0
      %1486 = vmatprep.subr.bf16.mxu0 0
      %1487 = vmatpush1.bf16.msra.mxu0 0
      %1488 = vmatprep.subr.bf16.mxu0 0
      %1489 = vmatpush1.bf16.msra.mxu0 0
      %1490 = vmatprep.subr.bf16.mxu0 0
      %1491 = vmatpush1.bf16.msra.mxu0 0
      %1492 = vmatprep.subr.bf16.mxu0 0
      %1493 = vmatpush1.bf16.msra.mxu0 0
      %1494 = vmatprep.subr.bf16.mxu0 0
      %1495 = vmatpush1.bf16.msra.mxu0 0
      %1496 = vmatprep.subr.bf16.mxu0 0
      %1497 = vmatpush1.bf16.msra.mxu0 0
      %1498 = vmatprep.subr.bf16.mxu0 0
      %1499 = vmatpush1.bf16.msra.mxu0 %v1482
      %1500 = vmatprep.subr.bf16.mxu0 0
      %1501 = vmatpush2.bf16.msra.mxu0 0
      %1502 = vmatprep.subr.bf16.mxu0 0
      %1503 = vmatpush2.bf16.msra.mxu0 0
      %1504 = vmatprep.subr.bf16.mxu0 0
      %1505 = vmatpush2.bf16.msra.mxu0 0
      %1506 = vmatprep.subr.bf16.mxu0 0
      %1507 = vmatpush2.bf16.msra.mxu0 0
      %1508 = vmatprep.subr.bf16.mxu0 0
      %1509 = vmatpush2.bf16.msra.mxu0 0
      %1510 = vmatprep.subr.bf16.mxu0 0
      %1511 = vmatpush2.bf16.msra.mxu0 0
      %1512 = vmatprep.subr.bf16.mxu0 0
      %1513 = vmatpush2.bf16.msra.mxu0 0
      %1514 = vmatprep.subr.bf16.mxu0 0
      %1515 = vmatpush2.bf16.msra.mxu0 0
      %1516 = vmatprep.mubr.bf16.mxu0 0
      %1517 = vmatmul.mubr.bf16.gmra.mxu0 %v1458
      %v1518 = vpop.f32.mrf.mxu0
      %v1519 = vadd.f32 0.0, %v1518
      %v1520 = vpop.f32.mrf.mxu0
      %v1521 = vpop.f32.mrf.mxu0
      %v1522 = vadd.f32 0.0, %v1521
      %v1523 = vpop.f32.mrf.mxu0
      %1524 = vmatprep.mubr.bf16.mxu0 0
      %1525 = vmatmul.mubr.bf16.gmra.mxu0 %v1461
      %v1526 = vpop.f32.mrf.mxu0
      %v1527 = vadd.f32 0.0, %v1526
      %v1528 = vpop.f32.mrf.mxu0
      %v1529 = vpop.f32.mrf.mxu0
      %v1530 = vadd.f32 0.0, %v1529
      %v1531 = vpop.f32.mrf.mxu0
      %1532 = vmatprep.mubr.bf16.mxu0 0
      %1533 = vmatmul.mubr.bf16.gmra.mxu0 %v1464
      %v1534 = vpop.f32.mrf.mxu0
      %v1535 = vadd.f32 0.0, %v1534
      %v1536 = vpop.f32.mrf.mxu0
      %v1537 = vpop.f32.mrf.mxu0
      %v1538 = vadd.f32 0.0, %v1537
      %v1539 = vpop.f32.mrf.mxu0
      %1540 = vmatprep.mubr.bf16.mxu0 0
      %1541 = vmatmul.mubr.bf16.gmra.mxu0 %v1467
      %v1542 = vpop.f32.mrf.mxu0
      %v1543 = vadd.f32 0.0, %v1542
      %v1544 = vpop.f32.mrf.mxu0
      %v1545 = vpop.f32.mrf.mxu0
      %v1546 = vadd.f32 0.0, %v1545
      %v1547 = vpop.f32.mrf.mxu0
      %1548 = vmatprep.mubr.bf16.mxu0 0
      %1549 = vmatmul.mubr.bf16.gmra.mxu0 %v1470
      %v1550 = vpop.f32.mrf.mxu0
      %v1551 = vadd.f32 0.0, %v1550
      %v1552 = vpop.f32.mrf.mxu0
      %v1553 = vpop.f32.mrf.mxu0
      %v1554 = vadd.f32 0.0, %v1553
      %v1555 = vpop.f32.mrf.mxu0
      %1556 = vmatprep.mubr.bf16.mxu0 0
      %1557 = vmatmul.mubr.bf16.gmra.mxu0 %v1473
      %v1558 = vpop.f32.mrf.mxu0
      %v1559 = vadd.f32 0.0, %v1558
      %v1560 = vpop.f32.mrf.mxu0
      %v1561 = vpop.f32.mrf.mxu0
      %v1562 = vadd.f32 0.0, %v1561
      %v1563 = vpop.f32.mrf.mxu0
      %1564 = vmatprep.mubr.bf16.mxu0 0
      %1565 = vmatmul.mubr.bf16.gmra.mxu0 %v1476
      %v1566 = vpop.f32.mrf.mxu0
      %v1567 = vadd.f32 0.0, %v1566
      %v1568 = vpop.f32.mrf.mxu0
      %v1569 = vpop.f32.mrf.mxu0
      %v1570 = vadd.f32 0.0, %v1569
      %v1571 = vpop.f32.mrf.mxu0
      %1572 = vmatprep.mubr.bf16.mxu0 0
      %1573 = vmatmul.mubr.bf16.gmra.mxu0 %v1479
      %v1574 = vpop.f32.mrf.mxu0
      %v1575 = vadd.f32 0.0, %v1574
      %v1576 = vpop.f32.mrf.mxu0
      %v1577 = vpop.f32.mrf.mxu0
      %v1578 = vadd.f32 0.0, %v1577
      %v1579 = vpop.f32.mrf.mxu0
      %1580 = vdwg.mxu0
      %v1581 = vadd.f32 %v1199, %v1519
      %v1582 = vadd.f32 %v1200, %v1522
      %v1583 = vadd.f32 %v1201, %v1527
      %v1584 = vadd.f32 %v1202, %v1530
      %v1585 = vadd.f32 %v1203, %v1535
      %v1586 = vadd.f32 %v1204, %v1538
      %v1587 = vadd.f32 %v1205, %v1543
      %v1588 = vadd.f32 %v1206, %v1546
      %v1589 = vadd.f32 %v1207, %v1551
      %v1590 = vadd.f32 %v1208, %v1554
      %v1591 = vadd.f32 %v1209, %v1559
      %v1592 = vadd.f32 %v1210, %v1562
      %v1593 = vadd.f32 %v1211, %v1567
      %v1594 = vadd.f32 %v1212, %v1570
      %v1595 = vadd.f32 %v1213, %v1575
      %v1596 = vadd.f32 %v1214, %v1578
      %v1597 = vld [vmem:[%s1016] sm:$0xe]
      %v1598 = vld [vmem:[%s1016 + $0xc] sm:$0xe]
      %v1599 = vld [vmem:[%s1016 + $0x18] sm:$0xe]
      %v1600 = vld [vmem:[%s1016 + $0x24] sm:$0xe]
      %v1601 = vld [vmem:[%s1016 + $0x30] sm:$0xe]
      %v1602 = vld [vmem:[%s1016 + $0x3c] sm:$0xe]
      %v1603 = vld [vmem:[%s1016 + $0x48] sm:$0xe]
      %v1604 = vld [vmem:[%s1016 + $0x54] sm:$0xe]
      %v1629 = vrot.slane %v1597, 5
      %v1630 = vrot.slane %v1629, 4
      %v1631 = vrot.slane %v1216, 5
      %v1632 = vsel %vm790, %v1630, %v1631
      %v1633 = vrot.slane %v1631, 4
      %v1634 = vrot.slane %v1217, 5
      %v1635 = vsel %vm790, %v1633, %v1634
      %v1636 = vrot.slane %v1598, 5
      %v1637 = vrot.slane %v1636, 4
      %v1638 = vrot.slane %v1219, 5
      %v1639 = vsel %vm790, %v1637, %v1638
      %v1640 = vrot.slane %v1638, 4
      %v1641 = vrot.slane %v1220, 5
      %v1642 = vsel %vm790, %v1640, %v1641
      %v1643 = vrot.slane %v1599, 5
      %v1644 = vrot.slane %v1643, 4
      %v1645 = vrot.slane %v1222, 5
      %v1646 = vsel %vm790, %v1644, %v1645
      %v1647 = vrot.slane %v1645, 4
      %v1648 = vrot.slane %v1223, 5
      %v1649 = vsel %vm790, %v1647, %v1648
      %v1650 = vrot.slane %v1600, 5
      %v1651 = vrot.slane %v1650, 4
      %v1652 = vrot.slane %v1225, 5
      %v1653 = vsel %vm790, %v1651, %v1652
      %v1654 = vrot.slane %v1652, 4
      %v1655 = vrot.slane %v1226, 5
      %v1656 = vsel %vm790, %v1654, %v1655
      %v1657 = vrot.slane %v1601, 5
      %v1658 = vrot.slane %v1657, 4
      %v1659 = vrot.slane %v1228, 5
      %v1660 = vsel %vm790, %v1658, %v1659
      %v1661 = vrot.slane %v1659, 4
      %v1662 = vrot.slane %v1229, 5
      %v1663 = vsel %vm790, %v1661, %v1662
      %v1664 = vrot.slane %v1602, 5
      %v1665 = vrot.slane %v1664, 4
      %v1666 = vrot.slane %v1231, 5
      %v1667 = vsel %vm790, %v1665, %v1666
      %v1668 = vrot.slane %v1666, 4
      %v1669 = vrot.slane %v1232, 5
      %v1670 = vsel %vm790, %v1668, %v1669
      %v1671 = vrot.slane %v1603, 5
      %v1672 = vrot.slane %v1671, 4
      %v1673 = vrot.slane %v1234, 5
      %v1674 = vsel %vm790, %v1672, %v1673
      %v1675 = vrot.slane %v1673, 4
      %v1676 = vrot.slane %v1235, 5
      %v1677 = vsel %vm790, %v1675, %v1676
      %v1678 = vrot.slane %v1604, 5
      %v1679 = vrot.slane %v1678, 4
      %v1680 = vrot.slane %v1237, 5
      %v1681 = vsel %vm790, %v1679, %v1680
      %v1682 = vrot.slane %v1680, 4
      %v1683 = vrot.slane %v1238, 5
      %v1684 = vsel %vm790, %v1682, %v1683
      %s1685 = scalar_lea.vmem %s1, 10
      %v1686 = vld [vmem:[%s1685] sm:$0x3]
      %v1687 = vunpack.c.l.b16 %v1632
      %v1688 = vunpack.c.l.b16 %v1635
      %v1689 = vunpack.c.l.b16 %v1639
      %v1690 = vunpack.c.l.b16 %v1642
      %v1691 = vunpack.c.l.b16 %v1646
      %v1692 = vunpack.c.l.b16 %v1649
      %v1693 = vunpack.c.l.b16 %v1653
      %v1694 = vunpack.c.l.b16 %v1656
      %v1695 = vunpack.c.l.b16 %v1660
      %v1696 = vunpack.c.l.b16 %v1663
      %v1697 = vunpack.c.l.b16 %v1667
      %v1698 = vunpack.c.l.b16 %v1670
      %v1699 = vunpack.c.l.b16 %v1674
      %v1700 = vunpack.c.l.b16 %v1677
      %v1701 = vunpack.c.l.b16 %v1681
      %v1702 = vunpack.c.l.b16 %v1684
      %v1703 = vpack.c.b16 %v1688, %v1687
      %v1704 = vpack.c.b16 %v1690, %v1689
      %v1705 = vpack.c.b16 %v1692, %v1691
      %v1706 = vpack.c.b16 %v1694, %v1693
      %v1707 = vpack.c.b16 %v1696, %v1695
      %v1708 = vpack.c.b16 %v1698, %v1697
      %v1709 = vpack.c.b16 %v1700, %v1699
      %v1710 = vpack.c.b16 %v1702, %v1701
      %v1712 = vsel %vm474, %v1703, 0
      %v1715 = vsel %vm474, %v1704, 0
      %v1718 = vsel %vm474, %v1705, 0
      %v1721 = vsel %vm474, %v1706, 0
      %v1724 = vsel %vm474, %v1707, 0
      %v1727 = vsel %vm474, %v1708, 0
      %v1730 = vsel %vm474, %v1709, 0
      %v1733 = vsel %vm474, %v1710, 0
      %v1736 = vsel %vm499, %v1686, 0
      %1738 = vmatprep.subr.bf16.mxu0 0
      %1739 = vmatpush1.bf16.msra.mxu0 0
      %1740 = vmatprep.subr.bf16.mxu0 0
      %1741 = vmatpush1.bf16.msra.mxu0 0
      %1742 = vmatprep.subr.bf16.mxu0 0
      %1743 = vmatpush1.bf16.msra.mxu0 0
      %1744 = vmatprep.subr.bf16.mxu0 0
      %1745 = vmatpush1.bf16.msra.mxu0 0
      %1746 = vmatprep.subr.bf16.mxu0 0
      %1747 = vmatpush1.bf16.msra.mxu0 0
      %1748 = vmatprep.subr.bf16.mxu0 0
      %1749 = vmatpush1.bf16.msra.mxu0 0
      %1750 = vmatprep.subr.bf16.mxu0 0
      %1751 = vmatpush1.bf16.msra.mxu0 0
      %1752 = vmatprep.subr.bf16.mxu0 0
      %1753 = vmatpush1.bf16.msra.mxu0 %v1736
      %1754 = vmatprep.subr.bf16.mxu0 0
      %1755 = vmatpush2.bf16.msra.mxu0 0
      %1756 = vmatprep.subr.bf16.mxu0 0
      %1757 = vmatpush2.bf16.msra.mxu0 0
      %1758 = vmatprep.subr.bf16.mxu0 0
      %1759 = vmatpush2.bf16.msra.mxu0 0
      %1760 = vmatprep.subr.bf16.mxu0 0
      %1761 = vmatpush2.bf16.msra.mxu0 0
      %1762 = vmatprep.subr.bf16.mxu0 0
      %1763 = vmatpush2.bf16.msra.mxu0 0
      %1764 = vmatprep.subr.bf16.mxu0 0
      %1765 = vmatpush2.bf16.msra.mxu0 0
      %1766 = vmatprep.subr.bf16.mxu0 0
      %1767 = vmatpush2.bf16.msra.mxu0 0
      %1768 = vmatprep.subr.bf16.mxu0 0
      %1769 = vmatpush2.bf16.msra.mxu0 0
      %1770 = vmatprep.mubr.bf16.mxu0 0
      %1771 = vmatmul.mubr.bf16.gmra.mxu0 %v1712
      %v1772 = vpop.f32.mrf.mxu0
      %v1773 = vadd.f32 0.0, %v1772
      %v1774 = vpop.f32.mrf.mxu0
      %v1775 = vpop.f32.mrf.mxu0
      %v1776 = vadd.f32 0.0, %v1775
      %v1777 = vpop.f32.mrf.mxu0
      %1778 = vmatprep.mubr.bf16.mxu0 0
      %1779 = vmatmul.mubr.bf16.gmra.mxu0 %v1715
      %v1780 = vpop.f32.mrf.mxu0
      %v1781 = vadd.f32 0.0, %v1780
      %v1782 = vpop.f32.mrf.mxu0
      %v1783 = vpop.f32.mrf.mxu0
      %v1784 = vadd.f32 0.0, %v1783
      %v1785 = vpop.f32.mrf.mxu0
      %1786 = vmatprep.mubr.bf16.mxu0 0
      %1787 = vmatmul.mubr.bf16.gmra.mxu0 %v1718
      %v1788 = vpop.f32.mrf.mxu0
      %v1789 = vadd.f32 0.0, %v1788
      %v1790 = vpop.f32.mrf.mxu0
      %v1791 = vpop.f32.mrf.mxu0
      %v1792 = vadd.f32 0.0, %v1791
      %v1793 = vpop.f32.mrf.mxu0
      %1794 = vmatprep.mubr.bf16.mxu0 0
      %1795 = vmatmul.mubr.bf16.gmra.mxu0 %v1721
      %v1796 = vpop.f32.mrf.mxu0
      %v1797 = vadd.f32 0.0, %v1796
      %v1798 = vpop.f32.mrf.mxu0
      %v1799 = vpop.f32.mrf.mxu0
      %v1800 = vadd.f32 0.0, %v1799
      %v1801 = vpop.f32.mrf.mxu0
      %1802 = vmatprep.mubr.bf16.mxu0 0
      %1803 = vmatmul.mubr.bf16.gmra.mxu0 %v1724
      %v1804 = vpop.f32.mrf.mxu0
      %v1805 = vadd.f32 0.0, %v1804
      %v1806 = vpop.f32.mrf.mxu0
      %v1807 = vpop.f32.mrf.mxu0
      %v1808 = vadd.f32 0.0, %v1807
      %v1809 = vpop.f32.mrf.mxu0
      %1810 = vmatprep.mubr.bf16.mxu0 0
      %1811 = vmatmul.mubr.bf16.gmra.mxu0 %v1727
      %v1812 = vpop.f32.mrf.mxu0
      %v1813 = vadd.f32 0.0, %v1812
      %v1814 = vpop.f32.mrf.mxu0
      %v1815 = vpop.f32.mrf.mxu0
      %v1816 = vadd.f32 0.0, %v1815
      %v1817 = vpop.f32.mrf.mxu0
      %1818 = vmatprep.mubr.bf16.mxu0 0
      %1819 = vmatmul.mubr.bf16.gmra.mxu0 %v1730
      %v1820 = vpop.f32.mrf.mxu0
      %v1821 = vadd.f32 0.0, %v1820
      %v1822 = vpop.f32.mrf.mxu0
      %v1823 = vpop.f32.mrf.mxu0
      %v1824 = vadd.f32 0.0, %v1823
      %v1825 = vpop.f32.mrf.mxu0
      %1826 = vmatprep.mubr.bf16.mxu0 0
      %1827 = vmatmul.mubr.bf16.gmra.mxu0 %v1733
      %v1828 = vpop.f32.mrf.mxu0
      %v1829 = vadd.f32 0.0, %v1828
      %v1830 = vpop.f32.mrf.mxu0
      %v1831 = vpop.f32.mrf.mxu0
      %v1832 = vadd.f32 0.0, %v1831
      %v1833 = vpop.f32.mrf.mxu0
      %1834 = vdwg.mxu0
      %v1835 = vadd.f32 %v1581, %v1773
      %v1836 = vadd.f32 %v1582, %v1776
      %v1837 = vadd.f32 %v1583, %v1781
      %v1838 = vadd.f32 %v1584, %v1784
      %v1839 = vadd.f32 %v1585, %v1789
      %v1840 = vadd.f32 %v1586, %v1792
      %v1841 = vadd.f32 %v1587, %v1797
      %v1842 = vadd.f32 %v1588, %v1800
      %v1843 = vadd.f32 %v1589, %v1805
      %v1844 = vadd.f32 %v1590, %v1808
      %v1845 = vadd.f32 %v1591, %v1813
      %v1846 = vadd.f32 %v1592, %v1816
      %v1847 = vadd.f32 %v1593, %v1821
      %v1848 = vadd.f32 %v1594, %v1824
      %v1849 = vadd.f32 %v1595, %v1829
      %v1850 = vadd.f32 %v1596, %v1832
      %s1851 = sadd.s32 %s224, 2
      %s1852 = smul.u32 %s1851, 3
      %s1853 = smul.addr %s1852, 4
      %s1854 = scalar_lea.vmem %s211, %s1853
      %v1855 = vld [vmem:[%s1854] sm:$0xf]
      %v1856 = vld [vmem:[%s1854 + $0x4] sm:$0xf]
      %v1857 = vld [vmem:[%s1854 + $0xc] sm:$0xf]
      %v1858 = vld [vmem:[%s1854 + $0x10] sm:$0xf]
      %v1859 = vld [vmem:[%s1854 + $0x18] sm:$0xf]
      %v1860 = vld [vmem:[%s1854 + $0x1c] sm:$0xf]
      %v1861 = vld [vmem:[%s1854 + $0x24] sm:$0xf]
      %v1862 = vld [vmem:[%s1854 + $0x28] sm:$0xf]
      %v1863 = vld [vmem:[%s1854 + $0x30] sm:$0xf]
      %v1864 = vld [vmem:[%s1854 + $0x34] sm:$0xf]
      %v1865 = vld [vmem:[%s1854 + $0x3c] sm:$0xf]
      %v1866 = vld [vmem:[%s1854 + $0x40] sm:$0xf]
      %v1867 = vld [vmem:[%s1854 + $0x48] sm:$0xf]
      %v1868 = vld [vmem:[%s1854 + $0x4c] sm:$0xf]
      %v1869 = vld [vmem:[%s1854 + $0x54] sm:$0xf]
      %v1870 = vld [vmem:[%s1854 + $0x58] sm:$0xf]
      %s1871 = scalar_lea.vmem %s1, 12
      %v1872 = vld [vmem:[%s1871] sm:$0x3]
      %v1889 = vunpack.c.l.b16 %v1855
      %v1890 = vunpack.c.l.b16 %v1856
      %v1891 = vunpack.c.l.b16 %v1857
      %v1892 = vunpack.c.l.b16 %v1858
      %v1893 = vunpack.c.l.b16 %v1859
      %v1894 = vunpack.c.l.b16 %v1860
      %v1895 = vunpack.c.l.b16 %v1861
      %v1896 = vunpack.c.l.b16 %v1862
      %v1897 = vunpack.c.l.b16 %v1863
      %v1898 = vunpack.c.l.b16 %v1864
      %v1899 = vunpack.c.l.b16 %v1865
      %v1900 = vunpack.c.l.b16 %v1866
      %v1901 = vunpack.c.l.b16 %v1867
      %v1902 = vunpack.c.l.b16 %v1868
      %v1903 = vunpack.c.l.b16 %v1869
      %v1904 = vunpack.c.l.b16 %v1870
      %v1905 = vpack.c.b16 %v1890, %v1889
      %v1906 = vpack.c.b16 %v1892, %v1891
      %v1907 = vpack.c.b16 %v1894, %v1893
      %v1908 = vpack.c.b16 %v1896, %v1895
      %v1909 = vpack.c.b16 %v1898, %v1897
      %v1910 = vpack.c.b16 %v1900, %v1899
      %v1911 = vpack.c.b16 %v1902, %v1901
      %v1912 = vpack.c.b16 %v1904, %v1903
      %v1914 = vsel %vm474, %v1905, 0
      %v1917 = vsel %vm474, %v1906, 0
      %v1920 = vsel %vm474, %v1907, 0
      %v1923 = vsel %vm474, %v1908, 0
      %v1926 = vsel %vm474, %v1909, 0
      %v1929 = vsel %vm474, %v1910, 0
      %v1932 = vsel %vm474, %v1911, 0
      %v1935 = vsel %vm474, %v1912, 0
      %v1938 = vsel %vm499, %v1872, 0
      %1940 = vmatprep.subr.bf16.mxu0 0
      %1941 = vmatpush1.bf16.msra.mxu0 0
      %1942 = vmatprep.subr.bf16.mxu0 0
      %1943 = vmatpush1.bf16.msra.mxu0 0
      %1944 = vmatprep.subr.bf16.mxu0 0
      %1945 = vmatpush1.bf16.msra.mxu0 0
      %1946 = vmatprep.subr.bf16.mxu0 0
      %1947 = vmatpush1.bf16.msra.mxu0 0
      %1948 = vmatprep.subr.bf16.mxu0 0
      %1949 = vmatpush1.bf16.msra.mxu0 0
      %1950 = vmatprep.subr.bf16.mxu0 0
      %1951 = vmatpush1.bf16.msra.mxu0 0
      %1952 = vmatprep.subr.bf16.mxu0 0
      %1953 = vmatpush1.bf16.msra.mxu0 0
      %1954 = vmatprep.subr.bf16.mxu0 0
      %1955 = vmatpush1.bf16.msra.mxu0 %v1938
      %1956 = vmatprep.subr.bf16.mxu0 0
      %1957 = vmatpush2.bf16.msra.mxu0 0
      %1958 = vmatprep.subr.bf16.mxu0 0
      %1959 = vmatpush2.bf16.msra.mxu0 0
      %1960 = vmatprep.subr.bf16.mxu0 0
      %1961 = vmatpush2.bf16.msra.mxu0 0
      %1962 = vmatprep.subr.bf16.mxu0 0
      %1963 = vmatpush2.bf16.msra.mxu0 0
      %1964 = vmatprep.subr.bf16.mxu0 0
      %1965 = vmatpush2.bf16.msra.mxu0 0
      %1966 = vmatprep.subr.bf16.mxu0 0
      %1967 = vmatpush2.bf16.msra.mxu0 0
      %1968 = vmatprep.subr.bf16.mxu0 0
      %1969 = vmatpush2.bf16.msra.mxu0 0
      %1970 = vmatprep.subr.bf16.mxu0 0
      %1971 = vmatpush2.bf16.msra.mxu0 0
      %1972 = vmatprep.mubr.bf16.mxu0 0
      %1973 = vmatmul.mubr.bf16.gmra.mxu0 %v1914
      %v1974 = vpop.f32.mrf.mxu0
      %v1975 = vadd.f32 0.0, %v1974
      %v1976 = vpop.f32.mrf.mxu0
      %v1977 = vpop.f32.mrf.mxu0
      %v1978 = vadd.f32 0.0, %v1977
      %v1979 = vpop.f32.mrf.mxu0
      %1980 = vmatprep.mubr.bf16.mxu0 0
      %1981 = vmatmul.mubr.bf16.gmra.mxu0 %v1917
      %v1982 = vpop.f32.mrf.mxu0
      %v1983 = vadd.f32 0.0, %v1982
      %v1984 = vpop.f32.mrf.mxu0
      %v1985 = vpop.f32.mrf.mxu0
      %v1986 = vadd.f32 0.0, %v1985
      %v1987 = vpop.f32.mrf.mxu0
      %1988 = vmatprep.mubr.bf16.mxu0 0
      %1989 = vmatmul.mubr.bf16.gmra.mxu0 %v1920
      %v1990 = vpop.f32.mrf.mxu0
      %v1991 = vadd.f32 0.0, %v1990
      %v1992 = vpop.f32.mrf.mxu0
      %v1993 = vpop.f32.mrf.mxu0
      %v1994 = vadd.f32 0.0, %v1993
      %v1995 = vpop.f32.mrf.mxu0
      %1996 = vmatprep.mubr.bf16.mxu0 0
      %1997 = vmatmul.mubr.bf16.gmra.mxu0 %v1923
      %v1998 = vpop.f32.mrf.mxu0
      %v1999 = vadd.f32 0.0, %v1998
      %v2000 = vpop.f32.mrf.mxu0
      %v2001 = vpop.f32.mrf.mxu0
      %v2002 = vadd.f32 0.0, %v2001
      %v2003 = vpop.f32.mrf.mxu0
      %2004 = vmatprep.mubr.bf16.mxu0 0
      %2005 = vmatmul.mubr.bf16.gmra.mxu0 %v1926
      %v2006 = vpop.f32.mrf.mxu0
      %v2007 = vadd.f32 0.0, %v2006
      %v2008 = vpop.f32.mrf.mxu0
      %v2009 = vpop.f32.mrf.mxu0
      %v2010 = vadd.f32 0.0, %v2009
      %v2011 = vpop.f32.mrf.mxu0
      %2012 = vmatprep.mubr.bf16.mxu0 0
      %2013 = vmatmul.mubr.bf16.gmra.mxu0 %v1929
      %v2014 = vpop.f32.mrf.mxu0
      %v2015 = vadd.f32 0.0, %v2014
      %v2016 = vpop.f32.mrf.mxu0
      %v2017 = vpop.f32.mrf.mxu0
      %v2018 = vadd.f32 0.0, %v2017
      %v2019 = vpop.f32.mrf.mxu0
      %2020 = vmatprep.mubr.bf16.mxu0 0
      %2021 = vmatmul.mubr.bf16.gmra.mxu0 %v1932
      %v2022 = vpop.f32.mrf.mxu0
      %v2023 = vadd.f32 0.0, %v2022
      %v2024 = vpop.f32.mrf.mxu0
      %v2025 = vpop.f32.mrf.mxu0
      %v2026 = vadd.f32 0.0, %v2025
      %v2027 = vpop.f32.mrf.mxu0
      %2028 = vmatprep.mubr.bf16.mxu0 0
      %2029 = vmatmul.mubr.bf16.gmra.mxu0 %v1935
      %v2030 = vpop.f32.mrf.mxu0
      %v2031 = vadd.f32 0.0, %v2030
      %v2032 = vpop.f32.mrf.mxu0
      %v2033 = vpop.f32.mrf.mxu0
      %v2034 = vadd.f32 0.0, %v2033
      %v2035 = vpop.f32.mrf.mxu0
      %2036 = vdwg.mxu0
      %v2037 = vadd.f32 %v1835, %v1975
      %v2038 = vadd.f32 %v1836, %v1978
      %v2039 = vadd.f32 %v1837, %v1983
      %v2040 = vadd.f32 %v1838, %v1986
      %v2041 = vadd.f32 %v1839, %v1991
      %v2042 = vadd.f32 %v1840, %v1994
      %v2043 = vadd.f32 %v1841, %v1999
      %v2044 = vadd.f32 %v1842, %v2002
      %v2045 = vadd.f32 %v1843, %v2007
      %v2046 = vadd.f32 %v1844, %v2010
      %v2047 = vadd.f32 %v1845, %v2015
      %v2048 = vadd.f32 %v1846, %v2018
      %v2049 = vadd.f32 %v1847, %v2023
      %v2050 = vadd.f32 %v1848, %v2026
      %v2051 = vadd.f32 %v1849, %v2031
      %v2052 = vadd.f32 %v1850, %v2034
      %v2053 = vld [vmem:[%s1854] sm:$0xf]
      %v2054 = vld [vmem:[%s1854 + $0x4] sm:$0xf]
      %v2055 = vld [vmem:[%s1854 + $0x8] sm:$0x1]
      %v2056 = vld [vmem:[%s1854 + $0xc] sm:$0xf]
      %v2057 = vld [vmem:[%s1854 + $0x10] sm:$0xf]
      %v2058 = vld [vmem:[%s1854 + $0x14] sm:$0x1]
      %v2059 = vld [vmem:[%s1854 + $0x18] sm:$0xf]
      %v2060 = vld [vmem:[%s1854 + $0x1c] sm:$0xf]
      %v2061 = vld [vmem:[%s1854 + $0x20] sm:$0x1]
      %v2062 = vld [vmem:[%s1854 + $0x24] sm:$0xf]
      %v2063 = vld [vmem:[%s1854 + $0x28] sm:$0xf]
      %v2064 = vld [vmem:[%s1854 + $0x2c] sm:$0x1]
      %v2065 = vld [vmem:[%s1854 + $0x30] sm:$0xf]
      %v2066 = vld [vmem:[%s1854 + $0x34] sm:$0xf]
      %v2067 = vld [vmem:[%s1854 + $0x38] sm:$0x1]
      %v2068 = vld [vmem:[%s1854 + $0x3c] sm:$0xf]
      %v2069 = vld [vmem:[%s1854 + $0x40] sm:$0xf]
      %v2070 = vld [vmem:[%s1854 + $0x44] sm:$0x1]
      %v2071 = vld [vmem:[%s1854 + $0x48] sm:$0xf]
      %v2072 = vld [vmem:[%s1854 + $0x4c] sm:$0xf]
      %v2073 = vld [vmem:[%s1854 + $0x50] sm:$0x1]
      %v2074 = vld [vmem:[%s1854 + $0x54] sm:$0xf]
      %v2075 = vld [vmem:[%s1854 + $0x58] sm:$0xf]
      %v2076 = vld [vmem:[%s1854 + $0x5c] sm:$0x1]
      %v2078 = vshrl.u32 %v2053, 16
      %v2080 = vrot.slane %v2078, 4
      %v2081 = vshll.u32 %v2053, 16
      %v2083 = vrot.slane %v2081, 5
      %v2084 = vor.u32 %v2080, %v2083
      %v2085 = vrot.slane %v2084, 4
      %v2087 = vshll.u32 %v2054, 16
      %v2089 = vrot.slane %v2087, 5
      %v2090 = vsel %vm255, %v2085, %v2089
      %v2091 = vshrl.u32 %v2054, 16
      %v2093 = vrot.slane %v2091, 4
      %v2094 = vor.u32 %v2093, %v2089
      %v2095 = vrot.slane %v2094, 4
      %v2097 = vshll.u32 %v2055, 16
      %v2099 = vrot.slane %v2097, 5
      %v2100 = vsel %vm255, %v2095, %v2099
      %v2102 = vshrl.u32 %v2056, 16
      %v2104 = vrot.slane %v2102, 4
      %v2105 = vshll.u32 %v2056, 16
      %v2107 = vrot.slane %v2105, 5
      %v2108 = vor.u32 %v2104, %v2107
      %v2109 = vrot.slane %v2108, 4
      %v2111 = vshll.u32 %v2057, 16
      %v2113 = vrot.slane %v2111, 5
      %v2114 = vsel %vm255, %v2109, %v2113
      %v2115 = vshrl.u32 %v2057, 16
      %v2117 = vrot.slane %v2115, 4
      %v2118 = vor.u32 %v2117, %v2113
      %v2119 = vrot.slane %v2118, 4
      %v2121 = vshll.u32 %v2058, 16
      %v2123 = vrot.slane %v2121, 5
      %v2124 = vsel %vm255, %v2119, %v2123
      %v2126 = vshrl.u32 %v2059, 16
      %v2128 = vrot.slane %v2126, 4
      %v2129 = vshll.u32 %v2059, 16
      %v2131 = vrot.slane %v2129, 5
      %v2132 = vor.u32 %v2128, %v2131
      %v2133 = vrot.slane %v2132, 4
      %v2135 = vshll.u32 %v2060, 16
      %v2137 = vrot.slane %v2135, 5
      %v2138 = vsel %vm255, %v2133, %v2137
      %v2139 = vshrl.u32 %v2060, 16
      %v2141 = vrot.slane %v2139, 4
      %v2142 = vor.u32 %v2141, %v2137
      %v2143 = vrot.slane %v2142, 4
      %v2145 = vshll.u32 %v2061, 16
      %v2147 = vrot.slane %v2145, 5
      %v2148 = vsel %vm255, %v2143, %v2147
      %v2150 = vshrl.u32 %v2062, 16
      %v2152 = vrot.slane %v2150, 4
      %v2153 = vshll.u32 %v2062, 16
      %v2155 = vrot.slane %v2153, 5
      %v2156 = vor.u32 %v2152, %v2155
      %v2157 = vrot.slane %v2156, 4
      %v2159 = vshll.u32 %v2063, 16
      %v2161 = vrot.slane %v2159, 5
      %v2162 = vsel %vm255, %v2157, %v2161
      %v2163 = vshrl.u32 %v2063, 16
      %v2165 = vrot.slane %v2163, 4
      %v2166 = vor.u32 %v2165, %v2161
      %v2167 = vrot.slane %v2166, 4
      %v2169 = vshll.u32 %v2064, 16
      %v2171 = vrot.slane %v2169, 5
      %v2172 = vsel %vm255, %v2167, %v2171
      %v2174 = vshrl.u32 %v2065, 16
      %v2176 = vrot.slane %v2174, 4
      %v2177 = vshll.u32 %v2065, 16
      %v2179 = vrot.slane %v2177, 5
      %v2180 = vor.u32 %v2176, %v2179
      %v2181 = vrot.slane %v2180, 4
      %v2183 = vshll.u32 %v2066, 16
      %v2185 = vrot.slane %v2183, 5
      %v2186 = vsel %vm255, %v2181, %v2185
      %v2187 = vshrl.u32 %v2066, 16
      %v2189 = vrot.slane %v2187, 4
      %v2190 = vor.u32 %v2189, %v2185
      %v2191 = vrot.slane %v2190, 4
      %v2193 = vshll.u32 %v2067, 16
      %v2195 = vrot.slane %v2193, 5
      %v2196 = vsel %vm255, %v2191, %v2195
      %v2198 = vshrl.u32 %v2068, 16
      %v2200 = vrot.slane %v2198, 4
      %v2201 = vshll.u32 %v2068, 16
      %v2203 = vrot.slane %v2201, 5
      %v2204 = vor.u32 %v2200, %v2203
      %v2205 = vrot.slane %v2204, 4
      %v2207 = vshll.u32 %v2069, 16
      %v2209 = vrot.slane %v2207, 5
      %v2210 = vsel %vm255, %v2205, %v2209
      %v2211 = vshrl.u32 %v2069, 16
      %v2213 = vrot.slane %v2211, 4
      %v2214 = vor.u32 %v2213, %v2209
      %v2215 = vrot.slane %v2214, 4
      %v2217 = vshll.u32 %v2070, 16
      %v2219 = vrot.slane %v2217, 5
      %v2220 = vsel %vm255, %v2215, %v2219
      %v2222 = vshrl.u32 %v2071, 16
      %v2224 = vrot.slane %v2222, 4
      %v2225 = vshll.u32 %v2071, 16
      %v2227 = vrot.slane %v2225, 5
      %v2228 = vor.u32 %v2224, %v2227
      %v2229 = vrot.slane %v2228, 4
      %v2231 = vshll.u32 %v2072, 16
      %v2233 = vrot.slane %v2231, 5
      %v2234 = vsel %vm255, %v2229, %v2233
      %v2235 = vshrl.u32 %v2072, 16
      %v2237 = vrot.slane %v2235, 4
      %v2238 = vor.u32 %v2237, %v2233
      %v2239 = vrot.slane %v2238, 4
      %v2241 = vshll.u32 %v2073, 16
      %v2243 = vrot.slane %v2241, 5
      %v2244 = vsel %vm255, %v2239, %v2243
      %v2246 = vshrl.u32 %v2074, 16
      %v2248 = vrot.slane %v2246, 4
      %v2249 = vshll.u32 %v2074, 16
      %v2251 = vrot.slane %v2249, 5
      %v2252 = vor.u32 %v2248, %v2251
      %v2253 = vrot.slane %v2252, 4
      %v2255 = vshll.u32 %v2075, 16
      %v2257 = vrot.slane %v2255, 5
      %v2258 = vsel %vm255, %v2253, %v2257
      %v2259 = vshrl.u32 %v2075, 16
      %v2261 = vrot.slane %v2259, 4
      %v2262 = vor.u32 %v2261, %v2257
      %v2263 = vrot.slane %v2262, 4
      %v2265 = vshll.u32 %v2076, 16
      %v2267 = vrot.slane %v2265, 5
      %v2268 = vsel %vm255, %v2263, %v2267
      %s2269 = scalar_lea.vmem %s1, 14
      %v2270 = vld [vmem:[%s2269] sm:$0x3]
      %v2271 = vunpack.c.l.b16 %v2090
      %v2272 = vunpack.c.l.b16 %v2100
      %v2273 = vunpack.c.l.b16 %v2114
      %v2274 = vunpack.c.l.b16 %v2124
      %v2275 = vunpack.c.l.b16 %v2138
      %v2276 = vunpack.c.l.b16 %v2148
      %v2277 = vunpack.c.l.b16 %v2162
      %v2278 = vunpack.c.l.b16 %v2172
      %v2279 = vunpack.c.l.b16 %v2186
      %v2280 = vunpack.c.l.b16 %v2196
      %v2281 = vunpack.c.l.b16 %v2210
      %v2282 = vunpack.c.l.b16 %v2220
      %v2283 = vunpack.c.l.b16 %v2234
      %v2284 = vunpack.c.l.b16 %v2244
      %v2285 = vunpack.c.l.b16 %v2258
      %v2286 = vunpack.c.l.b16 %v2268
      %v2287 = vpack.c.b16 %v2272, %v2271
      %v2288 = vpack.c.b16 %v2274, %v2273
      %v2289 = vpack.c.b16 %v2276, %v2275
      %v2290 = vpack.c.b16 %v2278, %v2277
      %v2291 = vpack.c.b16 %v2280, %v2279
      %v2292 = vpack.c.b16 %v2282, %v2281
      %v2293 = vpack.c.b16 %v2284, %v2283
      %v2294 = vpack.c.b16 %v2286, %v2285
      %v2296 = vsel %vm474, %v2287, 0
      %v2299 = vsel %vm474, %v2288, 0
      %v2302 = vsel %vm474, %v2289, 0
      %v2305 = vsel %vm474, %v2290, 0
      %v2308 = vsel %vm474, %v2291, 0
      %v2311 = vsel %vm474, %v2292, 0
      %v2314 = vsel %vm474, %v2293, 0
      %v2317 = vsel %vm474, %v2294, 0
      %v2320 = vsel %vm499, %v2270, 0
      %2322 = vmatprep.subr.bf16.mxu0 0
      %2323 = vmatpush1.bf16.msra.mxu0 0
      %2324 = vmatprep.subr.bf16.mxu0 0
      %2325 = vmatpush1.bf16.msra.mxu0 0
      %2326 = vmatprep.subr.bf16.mxu0 0
      %2327 = vmatpush1.bf16.msra.mxu0 0
      %2328 = vmatprep.subr.bf16.mxu0 0
      %2329 = vmatpush1.bf16.msra.mxu0 0
      %2330 = vmatprep.subr.bf16.mxu0 0
      %2331 = vmatpush1.bf16.msra.mxu0 0
      %2332 = vmatprep.subr.bf16.mxu0 0
      %2333 = vmatpush1.bf16.msra.mxu0 0
      %2334 = vmatprep.subr.bf16.mxu0 0
      %2335 = vmatpush1.bf16.msra.mxu0 0
      %2336 = vmatprep.subr.bf16.mxu0 0
      %2337 = vmatpush1.bf16.msra.mxu0 %v2320
      %2338 = vmatprep.subr.bf16.mxu0 0
      %2339 = vmatpush2.bf16.msra.mxu0 0
      %2340 = vmatprep.subr.bf16.mxu0 0
      %2341 = vmatpush2.bf16.msra.mxu0 0
      %2342 = vmatprep.subr.bf16.mxu0 0
      %2343 = vmatpush2.bf16.msra.mxu0 0
      %2344 = vmatprep.subr.bf16.mxu0 0
      %2345 = vmatpush2.bf16.msra.mxu0 0
      %2346 = vmatprep.subr.bf16.mxu0 0
      %2347 = vmatpush2.bf16.msra.mxu0 0
      %2348 = vmatprep.subr.bf16.mxu0 0
      %2349 = vmatpush2.bf16.msra.mxu0 0
      %2350 = vmatprep.subr.bf16.mxu0 0
      %2351 = vmatpush2.bf16.msra.mxu0 0
      %2352 = vmatprep.subr.bf16.mxu0 0
      %2353 = vmatpush2.bf16.msra.mxu0 0
      %2354 = vmatprep.mubr.bf16.mxu0 0
      %2355 = vmatmul.mubr.bf16.gmra.mxu0 %v2296
      %v2356 = vpop.f32.mrf.mxu0
      %v2357 = vadd.f32 0.0, %v2356
      %v2358 = vpop.f32.mrf.mxu0
      %v2359 = vpop.f32.mrf.mxu0
      %v2360 = vadd.f32 0.0, %v2359
      %v2361 = vpop.f32.mrf.mxu0
      %2362 = vmatprep.mubr.bf16.mxu0 0
      %2363 = vmatmul.mubr.bf16.gmra.mxu0 %v2299
      %v2364 = vpop.f32.mrf.mxu0
      %v2365 = vadd.f32 0.0, %v2364
      %v2366 = vpop.f32.mrf.mxu0
      %v2367 = vpop.f32.mrf.mxu0
      %v2368 = vadd.f32 0.0, %v2367
      %v2369 = vpop.f32.mrf.mxu0
      %2370 = vmatprep.mubr.bf16.mxu0 0
      %2371 = vmatmul.mubr.bf16.gmra.mxu0 %v2302
      %v2372 = vpop.f32.mrf.mxu0
      %v2373 = vadd.f32 0.0, %v2372
      %v2374 = vpop.f32.mrf.mxu0
      %v2375 = vpop.f32.mrf.mxu0
      %v2376 = vadd.f32 0.0, %v2375
      %v2377 = vpop.f32.mrf.mxu0
      %2378 = vmatprep.mubr.bf16.mxu0 0
      %2379 = vmatmul.mubr.bf16.gmra.mxu0 %v2305
      %v2380 = vpop.f32.mrf.mxu0
      %v2381 = vadd.f32 0.0, %v2380
      %v2382 = vpop.f32.mrf.mxu0
      %v2383 = vpop.f32.mrf.mxu0
      %v2384 = vadd.f32 0.0, %v2383
      %v2385 = vpop.f32.mrf.mxu0
      %2386 = vmatprep.mubr.bf16.mxu0 0
      %2387 = vmatmul.mubr.bf16.gmra.mxu0 %v2308
      %v2388 = vpop.f32.mrf.mxu0
      %v2389 = vadd.f32 0.0, %v2388
      %v2390 = vpop.f32.mrf.mxu0
      %v2391 = vpop.f32.mrf.mxu0
      %v2392 = vadd.f32 0.0, %v2391
      %v2393 = vpop.f32.mrf.mxu0
      %2394 = vmatprep.mubr.bf16.mxu0 0
      %2395 = vmatmul.mubr.bf16.gmra.mxu0 %v2311
      %v2396 = vpop.f32.mrf.mxu0
      %v2397 = vadd.f32 0.0, %v2396
      %v2398 = vpop.f32.mrf.mxu0
      %v2399 = vpop.f32.mrf.mxu0
      %v2400 = vadd.f32 0.0, %v2399
      %v2401 = vpop.f32.mrf.mxu0
      %2402 = vmatprep.mubr.bf16.mxu0 0
      %2403 = vmatmul.mubr.bf16.gmra.mxu0 %v2314
      %v2404 = vpop.f32.mrf.mxu0
      %v2405 = vadd.f32 0.0, %v2404
      %v2406 = vpop.f32.mrf.mxu0
      %v2407 = vpop.f32.mrf.mxu0
      %v2408 = vadd.f32 0.0, %v2407
      %v2409 = vpop.f32.mrf.mxu0
      %2410 = vmatprep.mubr.bf16.mxu0 0
      %2411 = vmatmul.mubr.bf16.gmra.mxu0 %v2317
      %v2412 = vpop.f32.mrf.mxu0
      %v2413 = vadd.f32 0.0, %v2412
      %v2414 = vpop.f32.mrf.mxu0
      %v2415 = vpop.f32.mrf.mxu0
      %v2416 = vadd.f32 0.0, %v2415
      %v2417 = vpop.f32.mrf.mxu0
      %2418 = vdwg.mxu0
      %v2419 = vadd.f32 %v2037, %v2357
      %v2420 = vadd.f32 %v2038, %v2360
      %v2421 = vadd.f32 %v2039, %v2365
      %v2422 = vadd.f32 %v2040, %v2368
      %v2423 = vadd.f32 %v2041, %v2373
      %v2424 = vadd.f32 %v2042, %v2376
      %v2425 = vadd.f32 %v2043, %v2381
      %v2426 = vadd.f32 %v2044, %v2384
      %v2427 = vadd.f32 %v2045, %v2389
      %v2428 = vadd.f32 %v2046, %v2392
      %v2429 = vadd.f32 %v2047, %v2397
      %v2430 = vadd.f32 %v2048, %v2400
      %v2431 = vadd.f32 %v2049, %v2405
      %v2432 = vadd.f32 %v2050, %v2408
      %v2433 = vadd.f32 %v2051, %v2413
      %v2434 = vadd.f32 %v2052, %v2416
      %v2435 = vld [vmem:[%s1854] sm:$0xe]
      %v2436 = vld [vmem:[%s1854 + $0xc] sm:$0xe]
      %v2437 = vld [vmem:[%s1854 + $0x18] sm:$0xe]
      %v2438 = vld [vmem:[%s1854 + $0x24] sm:$0xe]
      %v2439 = vld [vmem:[%s1854 + $0x30] sm:$0xe]
      %v2440 = vld [vmem:[%s1854 + $0x3c] sm:$0xe]
      %v2441 = vld [vmem:[%s1854 + $0x48] sm:$0xe]
      %v2442 = vld [vmem:[%s1854 + $0x54] sm:$0xe]
      %v2467 = vrot.slane %v2435, 5
      %v2468 = vrot.slane %v2467, 4
      %v2469 = vrot.slane %v2054, 5
      %v2470 = vsel %vm790, %v2468, %v2469
      %v2471 = vrot.slane %v2469, 4
      %v2472 = vrot.slane %v2055, 5
      %v2473 = vsel %vm790, %v2471, %v2472
      %v2474 = vrot.slane %v2436, 5
      %v2475 = vrot.slane %v2474, 4
      %v2476 = vrot.slane %v2057, 5
      %v2477 = vsel %vm790, %v2475, %v2476
      %v2478 = vrot.slane %v2476, 4
      %v2479 = vrot.slane %v2058, 5
      %v2480 = vsel %vm790, %v2478, %v2479
      %v2481 = vrot.slane %v2437, 5
      %v2482 = vrot.slane %v2481, 4
      %v2483 = vrot.slane %v2060, 5
      %v2484 = vsel %vm790, %v2482, %v2483
      %v2485 = vrot.slane %v2483, 4
      %v2486 = vrot.slane %v2061, 5
      %v2487 = vsel %vm790, %v2485, %v2486
      %v2488 = vrot.slane %v2438, 5
      %v2489 = vrot.slane %v2488, 4
      %v2490 = vrot.slane %v2063, 5
      %v2491 = vsel %vm790, %v2489, %v2490
      %v2492 = vrot.slane %v2490, 4
      %v2493 = vrot.slane %v2064, 5
      %v2494 = vsel %vm790, %v2492, %v2493
      %v2495 = vrot.slane %v2439, 5
      %v2496 = vrot.slane %v2495, 4
      %v2497 = vrot.slane %v2066, 5
      %v2498 = vsel %vm790, %v2496, %v2497
      %v2499 = vrot.slane %v2497, 4
      %v2500 = vrot.slane %v2067, 5
      %v2501 = vsel %vm790, %v2499, %v2500
      %v2502 = vrot.slane %v2440, 5
      %v2503 = vrot.slane %v2502, 4
      %v2504 = vrot.slane %v2069, 5
      %v2505 = vsel %vm790, %v2503, %v2504
      %v2506 = vrot.slane %v2504, 4
      %v2507 = vrot.slane %v2070, 5
      %v2508 = vsel %vm790, %v2506, %v2507
      %v2509 = vrot.slane %v2441, 5
      %v2510 = vrot.slane %v2509, 4
      %v2511 = vrot.slane %v2072, 5
      %v2512 = vsel %vm790, %v2510, %v2511
      %v2513 = vrot.slane %v2511, 4
      %v2514 = vrot.slane %v2073, 5
      %v2515 = vsel %vm790, %v2513, %v2514
      %v2516 = vrot.slane %v2442, 5
      %v2517 = vrot.slane %v2516, 4
      %v2518 = vrot.slane %v2075, 5
      %v2519 = vsel %vm790, %v2517, %v2518
      %v2520 = vrot.slane %v2518, 4
      %v2521 = vrot.slane %v2076, 5
      %v2522 = vsel %vm790, %v2520, %v2521
      %s2523 = scalar_lea.vmem %s1, 16
      %v2524 = vld [vmem:[%s2523] sm:$0x3]
      %v2525 = vunpack.c.l.b16 %v2470
      %v2526 = vunpack.c.l.b16 %v2473
      %v2527 = vunpack.c.l.b16 %v2477
      %v2528 = vunpack.c.l.b16 %v2480
      %v2529 = vunpack.c.l.b16 %v2484
      %v2530 = vunpack.c.l.b16 %v2487
      %v2531 = vunpack.c.l.b16 %v2491
      %v2532 = vunpack.c.l.b16 %v2494
      %v2533 = vunpack.c.l.b16 %v2498
      %v2534 = vunpack.c.l.b16 %v2501
      %v2535 = vunpack.c.l.b16 %v2505
      %v2536 = vunpack.c.l.b16 %v2508
      %v2537 = vunpack.c.l.b16 %v2512
      %v2538 = vunpack.c.l.b16 %v2515
      %v2539 = vunpack.c.l.b16 %v2519
      %v2540 = vunpack.c.l.b16 %v2522
      %v2541 = vpack.c.b16 %v2526, %v2525
      %v2542 = vpack.c.b16 %v2528, %v2527
      %v2543 = vpack.c.b16 %v2530, %v2529
      %v2544 = vpack.c.b16 %v2532, %v2531
      %v2545 = vpack.c.b16 %v2534, %v2533
      %v2546 = vpack.c.b16 %v2536, %v2535
      %v2547 = vpack.c.b16 %v2538, %v2537
      %v2548 = vpack.c.b16 %v2540, %v2539
      %v2550 = vsel %vm474, %v2541, 0
      %v2553 = vsel %vm474, %v2542, 0
      %v2556 = vsel %vm474, %v2543, 0
      %v2559 = vsel %vm474, %v2544, 0
      %v2562 = vsel %vm474, %v2545, 0
      %v2565 = vsel %vm474, %v2546, 0
      %v2568 = vsel %vm474, %v2547, 0
      %v2571 = vsel %vm474, %v2548, 0
      %v2574 = vsel %vm499, %v2524, 0
      %2576 = vmatprep.subr.bf16.mxu0 0
      %2577 = vmatpush1.bf16.msra.mxu0 0
      %2578 = vmatprep.subr.bf16.mxu0 0
      %2579 = vmatpush1.bf16.msra.mxu0 0
      %2580 = vmatprep.subr.bf16.mxu0 0
      %2581 = vmatpush1.bf16.msra.mxu0 0
      %2582 = vmatprep.subr.bf16.mxu0 0
      %2583 = vmatpush1.bf16.msra.mxu0 0
      %2584 = vmatprep.subr.bf16.mxu0 0
      %2585 = vmatpush1.bf16.msra.mxu0 0
      %2586 = vmatprep.subr.bf16.mxu0 0
      %2587 = vmatpush1.bf16.msra.mxu0 0
      %2588 = vmatprep.subr.bf16.mxu0 0
      %2589 = vmatpush1.bf16.msra.mxu0 0
      %2590 = vmatprep.subr.bf16.mxu0 0
      %2591 = vmatpush1.bf16.msra.mxu0 %v2574
      %2592 = vmatprep.subr.bf16.mxu0 0
      %2593 = vmatpush2.bf16.msra.mxu0 0
      %2594 = vmatprep.subr.bf16.mxu0 0
      %2595 = vmatpush2.bf16.msra.mxu0 0
      %2596 = vmatprep.subr.bf16.mxu0 0
      %2597 = vmatpush2.bf16.msra.mxu0 0
      %2598 = vmatprep.subr.bf16.mxu0 0
      %2599 = vmatpush2.bf16.msra.mxu0 0
      %2600 = vmatprep.subr.bf16.mxu0 0
      %2601 = vmatpush2.bf16.msra.mxu0 0
      %2602 = vmatprep.subr.bf16.mxu0 0
      %2603 = vmatpush2.bf16.msra.mxu0 0
      %2604 = vmatprep.subr.bf16.mxu0 0
      %2605 = vmatpush2.bf16.msra.mxu0 0
      %2606 = vmatprep.subr.bf16.mxu0 0
      %2607 = vmatpush2.bf16.msra.mxu0 0
      %2608 = vmatprep.mubr.bf16.mxu0 0
      %2609 = vmatmul.mubr.bf16.gmra.mxu0 %v2550
      %v2610 = vpop.f32.mrf.mxu0
      %v2611 = vadd.f32 0.0, %v2610
      %v2612 = vpop.f32.mrf.mxu0
      %v2613 = vpop.f32.mrf.mxu0
      %v2614 = vadd.f32 0.0, %v2613
      %v2615 = vpop.f32.mrf.mxu0
      %2616 = vmatprep.mubr.bf16.mxu0 0
      %2617 = vmatmul.mubr.bf16.gmra.mxu0 %v2553
      %v2618 = vpop.f32.mrf.mxu0
      %v2619 = vadd.f32 0.0, %v2618
      %v2620 = vpop.f32.mrf.mxu0
      %v2621 = vpop.f32.mrf.mxu0
      %v2622 = vadd.f32 0.0, %v2621
      %v2623 = vpop.f32.mrf.mxu0
      %2624 = vmatprep.mubr.bf16.mxu0 0
      %2625 = vmatmul.mubr.bf16.gmra.mxu0 %v2556
      %v2626 = vpop.f32.mrf.mxu0
      %v2627 = vadd.f32 0.0, %v2626
      %v2628 = vpop.f32.mrf.mxu0
      %v2629 = vpop.f32.mrf.mxu0
      %v2630 = vadd.f32 0.0, %v2629
      %v2631 = vpop.f32.mrf.mxu0
      %2632 = vmatprep.mubr.bf16.mxu0 0
      %2633 = vmatmul.mubr.bf16.gmra.mxu0 %v2559
      %v2634 = vpop.f32.mrf.mxu0
      %v2635 = vadd.f32 0.0, %v2634
      %v2636 = vpop.f32.mrf.mxu0
      %v2637 = vpop.f32.mrf.mxu0
      %v2638 = vadd.f32 0.0, %v2637
      %v2639 = vpop.f32.mrf.mxu0
      %2640 = vmatprep.mubr.bf16.mxu0 0
      %2641 = vmatmul.mubr.bf16.gmra.mxu0 %v2562
      %v2642 = vpop.f32.mrf.mxu0
      %v2643 = vadd.f32 0.0, %v2642
      %v2644 = vpop.f32.mrf.mxu0
      %v2645 = vpop.f32.mrf.mxu0
      %v2646 = vadd.f32 0.0, %v2645
      %v2647 = vpop.f32.mrf.mxu0
      %2648 = vmatprep.mubr.bf16.mxu0 0
      %2649 = vmatmul.mubr.bf16.gmra.mxu0 %v2565
      %v2650 = vpop.f32.mrf.mxu0
      %v2651 = vadd.f32 0.0, %v2650
      %v2652 = vpop.f32.mrf.mxu0
      %v2653 = vpop.f32.mrf.mxu0
      %v2654 = vadd.f32 0.0, %v2653
      %v2655 = vpop.f32.mrf.mxu0
      %2656 = vmatprep.mubr.bf16.mxu0 0
      %2657 = vmatmul.mubr.bf16.gmra.mxu0 %v2568
      %v2658 = vpop.f32.mrf.mxu0
      %v2659 = vadd.f32 0.0, %v2658
      %v2660 = vpop.f32.mrf.mxu0
      %v2661 = vpop.f32.mrf.mxu0
      %v2662 = vadd.f32 0.0, %v2661
      %v2663 = vpop.f32.mrf.mxu0
      %2664 = vmatprep.mubr.bf16.mxu0 0
      %2665 = vmatmul.mubr.bf16.gmra.mxu0 %v2571
      %v2666 = vpop.f32.mrf.mxu0
      %v2667 = vadd.f32 0.0, %v2666
      %v2668 = vpop.f32.mrf.mxu0
      %v2669 = vpop.f32.mrf.mxu0
      %v2670 = vadd.f32 0.0, %v2669
      %v2671 = vpop.f32.mrf.mxu0
      %2672 = vdwg.mxu0
      %v2673 = vadd.f32 %v2419, %v2611
      %v2674 = vadd.f32 %v2420, %v2614
      %v2675 = vadd.f32 %v2421, %v2619
      %v2676 = vadd.f32 %v2422, %v2622
      %v2677 = vadd.f32 %v2423, %v2627
      %v2678 = vadd.f32 %v2424, %v2630
      %v2679 = vadd.f32 %v2425, %v2635
      %v2680 = vadd.f32 %v2426, %v2638
      %v2681 = vadd.f32 %v2427, %v2643
      %v2682 = vadd.f32 %v2428, %v2646
      %v2683 = vadd.f32 %v2429, %v2651
      %v2684 = vadd.f32 %v2430, %v2654
      %v2685 = vadd.f32 %v2431, %v2659
      %v2686 = vadd.f32 %v2432, %v2662
      %v2687 = vadd.f32 %v2433, %v2667
      %v2688 = vadd.f32 %v2434, %v2670
      %v2689 = vld [vmem:[%s2] sm:$0x1]
      %v2691 = vlaneseq
      %v2692 = vshrl.u32 %v2691, 7
      %v2693 = vsub.s32 0, %v2692
      %v2694 = vrot.slane %v2689, %v2693
      %v2696 = vmul.f32 %v2673, %v2694
      %v2697 = vmul.f32 %v2674, %v2694
      %v2698 = vmul.f32 %v2675, %v2694
      %v2699 = vmul.f32 %v2676, %v2694
      %v2700 = vmul.f32 %v2677, %v2694
      %v2701 = vmul.f32 %v2678, %v2694
      %v2702 = vmul.f32 %v2679, %v2694
      %v2703 = vmul.f32 %v2680, %v2694
      %v2704 = vmul.f32 %v2681, %v2694
      %v2705 = vmul.f32 %v2682, %v2694
      %v2706 = vmul.f32 %v2683, %v2694
      %v2707 = vmul.f32 %v2684, %v2694
      %v2708 = vmul.f32 %v2685, %v2694
      %v2709 = vmul.f32 %v2686, %v2694
      %v2710 = vmul.f32 %v2687, %v2694
      %v2711 = vmul.f32 %v2688, %v2694
      %v2712 = vld [vmem:[%s3] sm:$0x1]
      %v2714 = vlaneseq
      %v2715 = vshrl.u32 %v2714, 7
      %v2716 = vsub.s32 0, %v2715
      %v2717 = vrot.slane %v2712, %v2716
      %v2719 = vadd.f32 %v2696, %v2717
      %v2720 = vadd.f32 %v2697, %v2717
      %v2721 = vadd.f32 %v2698, %v2717
      %v2722 = vadd.f32 %v2699, %v2717
      %v2723 = vadd.f32 %v2700, %v2717
      %v2724 = vadd.f32 %v2701, %v2717
      %v2725 = vadd.f32 %v2702, %v2717
      %v2726 = vadd.f32 %v2703, %v2717
      %v2727 = vadd.f32 %v2704, %v2717
      %v2728 = vadd.f32 %v2705, %v2717
      %v2729 = vadd.f32 %v2706, %v2717
      %v2730 = vadd.f32 %v2707, %v2717
      %v2731 = vadd.f32 %v2708, %v2717
      %v2732 = vadd.f32 %v2709, %v2717
      %v2733 = vadd.f32 %v2710, %v2717
      %v2734 = vadd.f32 %v2711, %v2717
      %v2735 = vxor.u32 %v2719, 2147483648
      %v2736 = vxor.u32 %v2720, 2147483648
      %v2737 = vxor.u32 %v2721, 2147483648
      %v2738 = vxor.u32 %v2722, 2147483648
      %v2739 = vxor.u32 %v2723, 2147483648
      %v2740 = vxor.u32 %v2724, 2147483648
      %v2741 = vxor.u32 %v2725, 2147483648
      %v2742 = vxor.u32 %v2726, 2147483648
      %v2743 = vxor.u32 %v2727, 2147483648
      %v2744 = vxor.u32 %v2728, 2147483648
      %v2745 = vxor.u32 %v2729, 2147483648
      %v2746 = vxor.u32 %v2730, 2147483648
      %v2747 = vxor.u32 %v2731, 2147483648
      %v2748 = vxor.u32 %v2732, 2147483648
      %v2749 = vxor.u32 %v2733, 2147483648
      %v2750 = vxor.u32 %v2734, 2147483648
      %v2751 = vmul.f32 %v2735, 1.442695
      %v2752 = vpow.pop %v2751
      %v2753 = vmul.f32 %v2736, 1.442695
      %v2754 = vpow.pop %v2753
      %v2755 = vmul.f32 %v2737, 1.442695
      %v2756 = vpow.pop %v2755
      %v2757 = vmul.f32 %v2738, 1.442695
      %v2758 = vpow.pop %v2757
      %v2759 = vmul.f32 %v2739, 1.442695
      %v2760 = vpow.pop %v2759
      %v2761 = vmul.f32 %v2740, 1.442695
      %v2762 = vpow.pop %v2761
      %v2763 = vmul.f32 %v2741, 1.442695
      %v2764 = vpow.pop %v2763
      %v2765 = vmul.f32 %v2742, 1.442695
      %v2766 = vpow.pop %v2765
      %v2767 = vmul.f32 %v2743, 1.442695
      %v2768 = vpow.pop %v2767
      %v2769 = vmul.f32 %v2744, 1.442695
      %v2770 = vpow.pop %v2769
      %v2771 = vmul.f32 %v2745, 1.442695
      %v2772 = vpow.pop %v2771
      %v2773 = vmul.f32 %v2746, 1.442695
      %v2774 = vpow.pop %v2773
      %v2775 = vmul.f32 %v2747, 1.442695
      %v2776 = vpow.pop %v2775
      %v2777 = vmul.f32 %v2748, 1.442695
      %v2778 = vpow.pop %v2777
      %v2779 = vmul.f32 %v2749, 1.442695
      %v2780 = vpow.pop %v2779
      %v2781 = vmul.f32 %v2750, 1.442695
      %v2782 = vpow.pop %v2781
      %v2783 = vadd.f32 %v2752, 1.0
      %v2784 = vadd.f32 %v2754, 1.0
      %v2785 = vadd.f32 %v2756, 1.0
      %v2786 = vadd.f32 %v2758, 1.0
      %v2787 = vadd.f32 %v2760, 1.0
      %v2788 = vadd.f32 %v2762, 1.0
      %v2789 = vadd.f32 %v2764, 1.0
      %v2790 = vadd.f32 %v2766, 1.0
      %v2791 = vadd.f32 %v2768, 1.0
      %v2792 = vadd.f32 %v2770, 1.0
      %v2793 = vadd.f32 %v2772, 1.0
      %v2794 = vadd.f32 %v2774, 1.0
      %v2795 = vadd.f32 %v2776, 1.0
      %v2796 = vadd.f32 %v2778, 1.0
      %v2797 = vadd.f32 %v2780, 1.0
      %v2798 = vadd.f32 %v2782, 1.0
      %v2799 = vrcp.pop %v2783
      %v2800 = vmul.f32 1.0, %v2799
      %v2801 = vrcp.pop %v2784
      %v2802 = vmul.f32 1.0, %v2801
      %v2803 = vrcp.pop %v2785
      %v2804 = vmul.f32 1.0, %v2803
      %v2805 = vrcp.pop %v2786
      %v2806 = vmul.f32 1.0, %v2805
      %v2807 = vrcp.pop %v2787
      %v2808 = vmul.f32 1.0, %v2807
      %v2809 = vrcp.pop %v2788
      %v2810 = vmul.f32 1.0, %v2809
      %v2811 = vrcp.pop %v2789
      %v2812 = vmul.f32 1.0, %v2811
      %v2813 = vrcp.pop %v2790
      %v2814 = vmul.f32 1.0, %v2813
      %v2815 = vrcp.pop %v2791
      %v2816 = vmul.f32 1.0, %v2815
      %v2817 = vrcp.pop %v2792
      %v2818 = vmul.f32 1.0, %v2817
      %v2819 = vrcp.pop %v2793
      %v2820 = vmul.f32 1.0, %v2819
      %v2821 = vrcp.pop %v2794
      %v2822 = vmul.f32 1.0, %v2821
      %v2823 = vrcp.pop %v2795
      %v2824 = vmul.f32 1.0, %v2823
      %v2825 = vrcp.pop %v2796
      %v2826 = vmul.f32 1.0, %v2825
      %v2827 = vrcp.pop %v2797
      %v2828 = vmul.f32 1.0, %v2827
      %v2829 = vrcp.pop %v2798
      %v2830 = vmul.f32 1.0, %v2829
      %v2831 = vmul.f32 %v2719, %v2800
      %v2832 = vmul.f32 %v2720, %v2802
      %v2833 = vmul.f32 %v2721, %v2804
      %v2834 = vmul.f32 %v2722, %v2806
      %v2835 = vmul.f32 %v2723, %v2808
      %v2836 = vmul.f32 %v2724, %v2810
      %v2837 = vmul.f32 %v2725, %v2812
      %v2838 = vmul.f32 %v2726, %v2814
      %v2839 = vmul.f32 %v2727, %v2816
      %v2840 = vmul.f32 %v2728, %v2818
      %v2841 = vmul.f32 %v2729, %v2820
      %v2842 = vmul.f32 %v2730, %v2822
      %v2843 = vmul.f32 %v2731, %v2824
      %v2844 = vmul.f32 %v2732, %v2826
      %v2845 = vmul.f32 %v2733, %v2828
      %v2846 = vmul.f32 %v2734, %v2830
      %vm2847 = vcmask 64512
      %2848 = vst.msk [vmem:[%s221] sm:$0xff] %vm2847, %v2831
      %2849 = vst.msk [vmem:[%s221 + $0x8] sm:$0xff] %vm2847, %v2832
      %2850 = vst.msk [vmem:[%s221 + $0x10] sm:$0xff] %vm2847, %v2833
      %2851 = vst.msk [vmem:[%s221 + $0x18] sm:$0xff] %vm2847, %v2834
      %2852 = vst.msk [vmem:[%s221 + $0x20] sm:$0xff] %vm2847, %v2835
      %2853 = vst.msk [vmem:[%s221 + $0x28] sm:$0xff] %vm2847, %v2836
      %2854 = vst.msk [vmem:[%s221 + $0x30] sm:$0xff] %vm2847, %v2837
      %2855 = vst.msk [vmem:[%s221 + $0x38] sm:$0xff] %vm2847, %v2838
      %2856 = vst.msk [vmem:[%s221 + $0x40] sm:$0xff] %vm2847, %v2839
      %2857 = vst.msk [vmem:[%s221 + $0x48] sm:$0xff] %vm2847, %v2840
      %2858 = vst.msk [vmem:[%s221 + $0x50] sm:$0xff] %vm2847, %v2841
      %2859 = vst.msk [vmem:[%s221 + $0x58] sm:$0xff] %vm2847, %v2842
      %2860 = vst.msk [vmem:[%s221 + $0x60] sm:$0xff] %vm2847, %v2843
      %2861 = vst.msk [vmem:[%s221 + $0x68] sm:$0xff] %vm2847, %v2844
      %2862 = vst.msk [vmem:[%s221 + $0x70] sm:$0xff] %vm2847, %v2845
      %2863 = vst.msk [vmem:[%s221 + $0x78] sm:$0xff] %vm2847, %v2846
      %s2864 = smul.u32 8, %s20
      %p2865 = scmp.lt.s32.totalorder %s19, 1
      %s2866 = scalar_select %p2865, %s19, 1
      %p2867 = scmp.lt.s32.totalorder %s2864, 15
      %s2868 = scalar_select %p2867, %s2864, 15
      %s2869 = smul.addr %s2868, 2
      %s2870 = smul.addr %s2866, 32
      %s2871 = sadd.s32 %s2869, %s2870
      %s2872 = smul.addr %s2871, 8
      %s2873 = scalar_lea.vmem %s4, %s2872
      // Predicated region
      $region37: #{tpu_custom_call.1} parent=35 // pred_check
        %p2874 = pneg %p136
      $region38: #{tpu_custom_call.1} parent=35 // pred_check_branch
        %2876 = sbr.rel (%p2874) target = $region40
      $region39: #{tpu_custom_call.1} parent=35 // pred_region
        %s2877 = smul.u32 8, %s20
      $region40: #{tpu_custom_call.1} parent=35 // pred_fallthru
        _
    $region36: #{tpu_custom_call.1} parent=5 // pred_fallthru
      _
    %p2878 = scmp.le.s32.totalorder 2, %s10
    // Predicated region
    $region41: #{tpu_custom_call.1} parent=5 // pred_check
      %p2879 = pneg %p2878
    $region42: #{tpu_custom_call.1} parent=5 // pred_check_branch
      %2881 = sbr.rel (%p2879) target = $region44
    $region43: #{tpu_custom_call.1} parent=5 // pred_region
      %s2882 = ssub.s32 %s10, 2
      // Predicated region
      $region45: #{tpu_custom_call.1} parent=43 // pred_check
        %p2883 = pneg %p142
      $region46: #{tpu_custom_call.1} parent=43 // pred_check_branch
        %2885 = sbr.rel (%p2883) target = $region48
      $region47: #{tpu_custom_call.1} parent=43 // pred_region
        %s2886 = smul.u32 8, %s22
        %p2887 = scmp.lt.s32.totalorder %s21, 1
        %s2888 = scalar_select %p2887, %s21, 1
        %p2889 = scmp.lt.s32.totalorder %s2886, 15
        %s2890 = scalar_select %p2889, %s2886, 15
        %s2891 = smul.addr %s2890, 2
        %s2892 = smul.addr %s2888, 32
        %s2893 = sadd.s32 %s2891, %s2892
        %s2894 = smul.addr %s2893, 8
        %s2895 = scalar_lea.vmem %s4, %s2894
      $region48: #{tpu_custom_call.1} parent=43 // pred_fallthru
        _
    $region44: #{tpu_custom_call.1} parent=5 // pred_fallthru
      _
  $region6: #{tpu_custom_call.1} parent=0 // loop_footer
    %s14 = sadd.s32 1, %s10
  $region7: #{tpu_custom_call.1} parent=0 // loop_footer_branch
    %9 = sbr.rel target = $region3
  $region8: #{tpu_custom_call.1} parent=0 // loop_exit
    _

</llo_original>
